<compile_context>
chip_gen: v7x
topology: tpu7x:2x2x1
jax: 0.10.0
libtpu: 0.0.40
codegen_flags: <defaults>
</compile_context>

<pallas_src>
import functools

import jax
import jax.numpy as jnp
from jax import lax
from jax.experimental import pallas as pl
from jax.experimental.pallas import tpu as pltpu


# ---------------------------------------------------------------------------
# Tiling selection
# ---------------------------------------------------------------------------

def _pick_tiling(D, dim, batch, a_bytes, b_bytes, *, tn=None, num_cores=2,
                 cap=12288, vmem_budget=40 << 20):
    """Pick (tn, num_cores): widest lane tile (multiple of 128) such that
    D % (num_cores * tn) == 0 and the VMEM working set stays inside budget
    (keeps us under v5e's 16 MiB scoped default head-room and v7x's 64 MiB)."""
    assert D % 128 == 0, (
        "pad D (zero columns appended to A and B once at setup) to a multiple "
        "of 128 and pass the unpadded size via true_cols")

    def vmem_cost(t):
        return (2 * dim * t * a_bytes        # double-buffered A tiles
                + 2 * batch * t * b_bytes    # manual B[idx] double buffer
                + 3 * batch * t * 4)         # f32 pred/diff/sq intermediates

    if tn is not None:
        assert tn % 128 == 0 and D % tn == 0
        nc = num_cores if (num_cores > 1 and D % (tn * num_cores) == 0) else 1
        return tn, nc

    def best_tn(nc):
        for k in range(max(min(cap, D // nc) // 128, 1), 0, -1):
            t = k * 128
            if D % (t * nc) == 0 and vmem_cost(t) <= vmem_budget:
                return t
        return None

    t_multi = best_tn(num_cores) if num_cores > 1 else None
    t_single = best_tn(1)
    # Prefer the multi-core split (v7x) unless it forces much narrower tiles.
    if t_multi is not None and (t_single is None or 2 * t_multi >= t_single):
        return t_multi, num_cores
    if t_single is not None:
        return t_single, 1
    return 128, 1


# ---------------------------------------------------------------------------
# Fused kernel:  d-loss partial sums  +  A @ A.T  in one pass over columns
# ---------------------------------------------------------------------------

def _d_r_kernel(idx_ref, x_ref, a_ref, b_hbm, dacc_ref, aat_ref, bbuf, sem, *,
                steps_per_core, precision):
    """Grid = (num_cores, steps_per_core); core c owns a contiguous column
    range.  Per step: wait this step's manually-gathered B[idx] tile, prefetch
    the next tile, MXU pred = x @ A_tile, VPU-fold (pred-B)^2 into a
    (batch,128) accumulator, MXU-accumulate A_tile @ A_tile.T."""
    c = pl.program_id(0)
    j = pl.program_id(1)
    n = pl.num_programs(1)
    batch, tn = bbuf.shape[1], bbuf.shape[2]

    def col_start(step):
        return pl.multiple_of((c * steps_per_core + step) * tn, 128)

    def fetch(step, slot):            # gather rows B[idx[r], col:col+tn]
        col = col_start(step)

        def issue(r, carry):
            pltpu.make_async_copy(
                b_hbm.at[idx_ref[r], pl.ds(col, tn)],
                bbuf.at[slot, r],
                sem.at[slot],
            ).start()
            return carry

        lax.fori_loop(0, batch, issue, 0)

    def wait(step, slot):             # wait the matching per-row DMAs
        col = col_start(step)

        def one(r, carry):
            pltpu.make_async_copy(
                b_hbm.at[idx_ref[r], pl.ds(col, tn)],
                bbuf.at[slot, r],
                sem.at[slot],
            ).wait()
            return carry

        lax.fori_loop(0, batch, one, 0)

    @pl.when(j == 0)
    def _init():
        dacc_ref[...] = jnp.zeros_like(dacc_ref)
        aat_ref[...] = jnp.zeros_like(aat_ref)
        fetch(0, 0)

    slot = j % 2
    wait(j, slot)

    @pl.when(j + 1 < n)
    def _prefetch_next():
        fetch(j + 1, 1 - slot)

    a = a_ref[...]                                        # (dim, tn)
    x = x_ref[...]                                        # (batch, dim)
    b = bbuf[slot].astype(jnp.float32)                    # (batch, tn)

    pred = jnp.dot(x, a, preferred_element_type=jnp.float32,
                   precision=precision)
    diff = pred - b
    sq = diff * diff                                      # (batch, tn) f32

    # Fold tn lanes into one 128-lane column block with lane-aligned static
    # slices: pure VPU adds each step.  The cross-lane reduce happens once,
    # in JAX, on the tiny (num_cores, batch, 128) output.
    part = sq[:, 0:128]
    for cc in range(1, tn // 128):
        part = part + sq[:, cc * 128:(cc + 1) * 128]
    dacc_ref[...] += part[None]

    # Fused A @ A.T partial for this column tile (contract the tn axis) --
    # rides on the otherwise idle MXU, saving a second full HBM pass over A.
    aat_ref[...] += lax.dot_general(
        a, a, dimension_numbers=(((1,), (1,)), ((), ())),
        preferred_element_type=jnp.float32, precision=precision)[None]


def d_and_r_pallas(x_batch, A, B, idx, *, true_cols=None, tn=None, num_cores=2,
                   cap=12288, vmem_budget=40 << 20):
    """Fused streaming pass returning
         d   = mean((x_batch @ A - B[idx])**2) over the first true_cols cols
         AAt = A @ A.T                         (f32, (dim, dim))

    B stays in HBM; the row gather B[idx] is done in-kernel with manual
    double-buffered DMAs (no XLA gather round trip).  Store A / B in bf16 at
    setup (not per call) to halve HBM traffic; accumulation is always f32.
    """
    batch, dim = x_batch.shape
    dim_a, D = A.shape
    N, D_b = B.shape
    assert dim_a == dim and D_b == D and idx.shape == (batch,)
    true_cols = D if true_cols is None else int(true_cols)

    a_bytes, b_bytes = A.dtype.itemsize, B.dtype.itemsize
    tn, num_cores = _pick_tiling(D, dim, batch, a_bytes, b_bytes, tn=tn,
                                 num_cores=num_cores, cap=cap,
                                 vmem_budget=vmem_budget)
    steps_per_core = D // (num_cores * tn)

    # x is tiny (batch x dim): matching it to A's streaming dtype is free.
    x_batch = x_batch.astype(A.dtype)
    idx = idx.astype(jnp.int32)
    precision = lax.Precision.HIGHEST if A.dtype == jnp.float32 else None

    vmem_est = (2 * dim * tn * a_bytes + 2 * batch * tn * b_bytes
                + 3 * batch * tn * 4 + 2 * batch * dim * a_bytes
                + (batch * 128 + dim * dim) * 4)
    cost = pl.CostEstimate(
        flops=2 * batch * dim * D + 2 * dim * dim * D,
        transcendentals=0,
        bytes_accessed=(dim * D * a_bytes + batch * D * b_bytes
                        + batch * dim * a_bytes
                        + num_cores * (batch * 128 + dim * dim) * 4))

    grid_spec = pltpu.PrefetchScalarGridSpec(
        num_scalar_prefetch=1,                  # idx -> SMEM, used for B gather
        grid=(num_cores, steps_per_core),
        in_specs=[
            # x stays VMEM resident across the whole grid.
            pl.BlockSpec((batch, dim), lambda c, j, idx_ref: (0, 0)),
            # A column tile, auto double-buffered by the Pallas pipeline.
            # TODO(synk): profile pipeline_mode=pl.Buffered(3) here.
            pl.BlockSpec((dim, tn),
                         lambda c, j, idx_ref: (0, c * steps_per_core + j)),
            # B stays in HBM; rows gathered in-kernel via manual DMA.
            pl.BlockSpec(memory_space=pl.ANY),
        ],
        out_specs=[
            # Per-core partial accumulators (distinct blocks per core -> no
            # race on the v7x two-TensorCore split).
            pl.BlockSpec((1, batch, 128), lambda c, j, idx_ref: (c, 0, 0)),
            pl.BlockSpec((1, dim, dim), lambda c, j, idx_ref: (c, 0, 0)),
        ],
        scratch_shapes=[
            pltpu.VMEM((2, batch, tn), B.dtype),   # manual B double buffer
            pltpu.SemaphoreType.DMA((2,)),          # one DMA sem per slot
        ],
    )

    dacc, aat = pl.pallas_call(
        functools.partial(_d_r_kernel, steps_per_core=steps_per_core,
                          precision=precision),
        out_shape=(jax.ShapeDtypeStruct((num_cores, batch, 128), jnp.float32),
                   jax.ShapeDtypeStruct((num_cores, dim, dim), jnp.float32)),
        grid_spec=grid_spec,
        compiler_params=pltpu.CompilerParams(
            dimension_semantics=("parallel", "arbitrary"),
            vmem_limit_bytes=int(min(64 << 20, max(2 * vmem_est, 16 << 20)))),
        cost_estimate=cost,
    )(idx, x_batch, A, B)

    # Tiny epilogue in JAX: cross-lane reduce + per-core partial sums.
    d = jnp.sum(dacc) / float(batch * true_cols)        # true (unpadded) denom
    return d, jnp.sum(aat, axis=0)


# ---------------------------------------------------------------------------
# Full model_vae.forward(): cheap terms in plain JAX, heavy terms fused kernel
# ---------------------------------------------------------------------------

def model_vae_forward(key, params, batch):
    x_mean, x_logvar = params["x_mean"], params["x_logvar"]
    A, B = params["A"], params["B"]
    labels = params["label"]
    W_ip, b_ip = params["W_ip"], params["b_ip"]
    centers, E = params["centers"], params["E"]
    true_cols = params.get("true_cols", B.shape[1])

    k_idx, k_eps = jax.random.split(key)
    N = B.shape[0]
    # random.sample(range(N), batch) -> uniform sample without replacement.
    idx = jax.random.choice(k_idx, N, shape=(batch,), replace=False)

    xm, xlv, lab = x_mean[idx], x_logvar[idx], labels[idx]
    eps = jax.random.normal(k_eps, xm.shape, dtype=xm.dtype)
    x = xm + jnp.exp(0.5 * xlv) * eps                       # sampling()

    cl = jnp.mean(jnp.sqrt(jnp.sum((xm - centers[lab]) ** 2, axis=1)))
    logits = x @ W_ip + b_ip                                # self.ip(x)
    crx = -jnp.mean(jax.nn.log_softmax(logits, -1)[jnp.arange(batch), lab])
    kl = jnp.mean(-0.5 * jnp.sum(1.0 + xlv - xm ** 2 - jnp.exp(xlv), axis=-1))
    rex = jnp.mean(jnp.sum(x ** 2, axis=-1))

    # One fused HBM pass: d-loss (with in-kernel B[idx] gather) and A @ A.T.
    d, aat = d_and_r_pallas(x, A, B, idx, true_cols=true_cols)
    r = jnp.mean((aat - E.astype(jnp.float32)) ** 2)
    re = jnp.asarray(0.0, jnp.float32)
    return d, r, crx, rex, kl, cl, re


if __name__ == "__main__":
    # Small shapes consistent with the module (real: N samples, dim=99,
    # D=53215*3 padded once to 159744 with true_cols=159645, 600 classes).
    N, DIM, D, BATCH, NUM_CLS = 16, 32, 384, 8, 12
    HI = lax.Precision.HIGHEST

    root = jax.random.PRNGKey(0)
    ks = jax.random.split(root, 9)
    params = dict(
        x_mean=jax.random.normal(ks[0], (N, DIM), jnp.float32),
        x_logvar=jax.random.normal(ks[1], (N, DIM), jnp.float32),
        A=jax.random.normal(ks[2], (DIM, D), jnp.float32),
        B=jax.random.normal(ks[3], (N, D), jnp.float32),       # data - mu
        label=jax.random.randint(ks[4], (N,), 0, NUM_CLS),
        W_ip=jax.random.normal(ks[5], (DIM, NUM_CLS), jnp.float32) * 0.1,
        b_ip=jnp.zeros((NUM_CLS,), jnp.float32),
        centers=jax.random.normal(ks[6], (NUM_CLS, DIM), jnp.float32),
        E=jnp.eye(DIM, dtype=jnp.float32),
    )

    # Full forward (fused Pallas kernel on the hot path).
    outs = jax.block_until_ready(model_vae_forward(ks[7], params, BATCH))

    # --- correctness checks of the fused kernel against plain JAX ----------
    kx, kA, kB, ki = jax.random.split(ks[8], 4)
    xb = jax.random.normal(kx, (BATCH, DIM), jnp.float32)
    idx_t = jax.random.permutation(ki, N)[:BATCH].astype(jnp.int32)

    # 1) small-D path (single wide tile, single core).
    d1, aat1 = d_and_r_pallas(xb, params["A"], params["B"], idx_t)
    ref_d1 = jnp.mean((jnp.dot(xb, params["A"], precision=HI)
                       - params["B"][idx_t]) ** 2)
    ref_aat1 = jnp.dot(params["A"], params["A"].T, precision=HI)
    assert jnp.allclose(d1, ref_d1, rtol=1e-4, atol=1e-4), (d1, ref_d1)
    assert jnp.allclose(aat1, ref_aat1, rtol=1e-4, atol=1e-2)

    # 2) multi-step, two-core split: wide tiles + manual B double-buffering.
    D2 = 2048
    A2 = jax.random.normal(kA, (DIM, D2), jnp.float32)
    B2 = jax.random.normal(kB, (N, D2), jnp.float32)
    d2, aat2 = d_and_r_pallas(xb, A2, B2, idx_t, tn=256, num_cores=2)
    ref_d2 = jnp.mean((jnp.dot(xb, A2, precision=HI) - B2[idx_t]) ** 2)
    ref_aat2 = jnp.dot(A2, A2.T, precision=HI)
    assert jnp.allclose(d2, ref_d2, rtol=1e-4, atol=1e-4), (d2, ref_d2)
    assert jnp.allclose(aat2, ref_aat2, rtol=1e-4, atol=1e-2)

    # 3) bf16-resident streaming (store A/B in bf16 once, no per-call cast).
    A2b, B2b = A2.astype(jnp.bfloat16), B2.astype(jnp.bfloat16)
    d3, aat3 = d_and_r_pallas(xb, A2b, B2b, idx_t, tn=512, num_cores=2)
    xbr = xb.astype(jnp.bfloat16).astype(jnp.float32)
    A2r = A2b.astype(jnp.float32)
    B2r = B2b.astype(jnp.float32)
    ref_d3 = jnp.mean((jnp.dot(xbr, A2r, precision=HI) - B2r[idx_t]) ** 2)
    ref_aat3 = jnp.dot(A2r, A2r.T, precision=HI)
    assert jnp.allclose(d3, ref_d3, rtol=1e-2, atol=1e-2), (d3, ref_d3)
    assert jnp.allclose(aat3, ref_aat3, rtol=1e-2, atol=1e-1)

    # 4) zero-padded columns + true denom (real model: 159645 -> 159744).
    A2p = jnp.pad(A2, ((0, 0), (0, 128)))
    B2p = jnp.pad(B2, ((0, 0), (0, 128)))
    d4, aat4 = d_and_r_pallas(xb, A2p, B2p, idx_t, true_cols=D2)
    assert jnp.allclose(d4, ref_d2, rtol=1e-4, atol=1e-4), (d4, ref_d2)
    assert jnp.allclose(aat4, ref_aat2, rtol=1e-4, atol=1e-2)

    jax.block_until_ready((outs, d1, d2, d3, d4))
    print("KERNEL_OK")
</pallas_src>

<mosaic_0001>
module attributes {stable_mosaic.version = 11 : i64} {
  func.func @_d_r_kernel(%arg0: i32, %arg1: i32, %arg2: memref<8xi32, #tpu.memory_space<smem>>, %arg3: memref<8x32xf32, #tpu.memory_space<vmem>>, %arg4: memref<32x384xf32, #tpu.memory_space<vmem>>, %arg5: memref<16x384xf32, #tpu.memory_space<any>>, %arg6: memref<1x8x128xf32, #tpu.memory_space<vmem>>, %arg7: memref<1x32x32xf32, #tpu.memory_space<vmem>>, %arg8: memref<2x8x384xf32, #tpu.memory_space<vmem>>, %arg9: memref<2x!tpu.dma_semaphore, #tpu.memory_space<semaphore_mem>>) attributes {dimension_semantics = [#tpu.dimension_semantics<parallel>, #tpu.dimension_semantics<arbitrary>], iteration_bounds = array<i64: 1, 1>, scalar_prefetch = 1 : i64, scratch_operands = 2 : i64, tpu.core_type = #tpu.core_type<tc>, window_params = [{pipeline_mode = #tpu.pipeline_mode<synchronous>, transform_indices = @transform_0, window_bounds = array<i64: 8, 32>}, {transform_indices = @transform_1, window_bounds = array<i64: 32, 384>}, {}, {transform_indices = @transform_3, window_bounds = array<i64: 1, 8, 128>}, {transform_indices = @transform_4, window_bounds = array<i64: 1, 32, 32>}]} {
    %c0_i32 = arith.constant 0 : i32
    %0 = arith.cmpi eq, %arg1, %c0_i32 : i32
    %1 = arith.extui %0 : i1 to i32
    %c0_i32_0 = arith.constant 0 : i32
    %2 = arith.cmpi ne, %1, %c0_i32_0 : i32
    scf.if %2 {
      %cst_30 = arith.constant 0.000000e+00 : f32
      %44 = vector.broadcast %cst_30 : f32 to vector<1x8x128xf32>
      %c0_31 = arith.constant 0 : index
      %c0_32 = arith.constant 0 : index
      %c0_33 = arith.constant 0 : index
      %45 = vector.load %arg6[%c0_31, %c0_32, %c0_33] : memref<1x8x128xf32, #tpu.memory_space<vmem>>, vector<1x8x128xf32>
      tpu.vector_store %arg6[%c0_31, %c0_32, %c0_33], %44 {strides = array<i32>} : memref<1x8x128xf32, #tpu.memory_space<vmem>>, vector<1x8x128xf32>,
      %cst_34 = arith.constant 0.000000e+00 : f32
      %46 = vector.broadcast %cst_34 : f32 to vector<1x32x32xf32>
      %c0_35 = arith.constant 0 : index
      %c0_36 = arith.constant 0 : index
      %c0_37 = arith.constant 0 : index
      %47 = vector.load %arg7[%c0_35, %c0_36, %c0_37] : memref<1x32x32xf32, #tpu.memory_space<vmem>>, vector<1x32x32xf32>
      tpu.vector_store %arg7[%c0_35, %c0_36, %c0_37], %46 {strides = array<i32>} : memref<1x32x32xf32, #tpu.memory_space<vmem>>, vector<1x32x32xf32>,
      %c1_i32_38 = arith.constant 1 : i32
      %48 = arith.muli %arg0, %c1_i32_38 : i32
      %c0_i32_39 = arith.constant 0 : i32
      %49 = arith.addi %48, %c0_i32_39 : i32
      %c384_i32_40 = arith.constant 384 : i32
      %50 = arith.muli %49, %c384_i32_40 : i32
      %51 = tpu.assume_multiple %50, 128 : i32
      %c0_i32_41 = arith.constant 0 : i32
      %c8_i32_42 = arith.constant 8 : i32
      %52 = arith.addi %c0_i32_41, %c8_i32_42 : i32
      %c1_i32_43 = arith.constant 1 : i32
      scf.for %arg10 = %c0_i32_41 to %52 step %c1_i32_43  : i32 {
        %53 = arith.index_cast %arg10 : i32 to index
        %54 = memref.load %arg2[%53] : memref<8xi32, #tpu.memory_space<smem>>
        %c0_i32_45 = arith.constant 0 : i32
        %c0_i32_46 = arith.constant 0 : i32
        %55 = tpu.memref_slice %arg5[%54, %51] : memref<16x384xf32, #tpu.memory_space<any>> -> memref<1x384xf32, #tpu.memory_space<any>>
        %56 = tpu.memref_squeeze %55 : memref<1x384xf32, #tpu.memory_space<any>> -> memref<384xf32, #tpu.memory_space<any>>
        %c0_i32_47 = arith.constant 0 : i32
        %57 = tpu.memref_slice %arg8[%c0_i32_45, %arg10, %c0_i32_47] : memref<2x8x384xf32, #tpu.memory_space<vmem>> -> memref<1x1x384xf32, #tpu.memory_space<vmem>>
        %58 = tpu.memref_squeeze %57 : memref<1x1x384xf32, #tpu.memory_space<vmem>> -> memref<384xf32, #tpu.memory_space<vmem>>
        %59 = tpu.memref_slice %arg9[%c0_i32_46] : memref<2x!tpu.dma_semaphore, #tpu.memory_space<semaphore_mem>> -> memref<1x!tpu.dma_semaphore, #tpu.memory_space<semaphore_mem>>
        %60 = tpu.memref_squeeze %59 : memref<1x!tpu.dma_semaphore, #tpu.memory_space<semaphore_mem>> -> memref<!tpu.dma_semaphore, #tpu.memory_space<semaphore_mem>>
        tpu.enqueue_dma source(%56 : memref<384xf32, #tpu.memory_space<any>>) target(%58 : memref<384xf32, #tpu.memory_space<vmem>>) target_semaphore(%60 : memref<!tpu.dma_semaphore, #tpu.memory_space<semaphore_mem>>)
      }
      %c8_i32_44 = arith.constant 8 : i32
    } else {
    }
    %c2_i32 = arith.constant 2 : i32
    %c0_i32_1 = arith.constant 0 : i32
    %3 = arith.cmpi eq, %c2_i32, %c0_i32_1 : i32
    %c1_i32 = arith.constant 1 : i32
    %4 = arith.select %3, %c1_i32, %c2_i32 : i32
    %5 = arith.remsi %arg1, %4 : i32
    %c0_i32_2 = arith.constant 0 : i32
    %6 = arith.cmpi ne, %5, %c0_i32_2 : i32
    %c0_i32_3 = arith.constant 0 : i32
    %7 = arith.cmpi slt, %5, %c0_i32_3 : i32
    %c0_i32_4 = arith.constant 0 : i32
    %8 = arith.cmpi slt, %4, %c0_i32_4 : i32
    %9 = arith.xori %7, %8 : i1
    %10 = arith.andi %9, %6 : i1
    %11 = arith.addi %5, %4 : i32
    %12 = arith.select %10, %11, %5 : i32
    %c1_i32_5 = arith.constant 1 : i32
    %13 = arith.muli %arg0, %c1_i32_5 : i32
    %14 = arith.addi %13, %arg1 : i32
    %c384_i32 = arith.constant 384 : i32
    %15 = arith.muli %14, %c384_i32 : i32
    %16 = tpu.assume_multiple %15, 128 : i32
    %c0_i32_6 = arith.constant 0 : i32
    %c8_i32 = arith.constant 8 : i32
    %17 = arith.addi %c0_i32_6, %c8_i32 : i32
    %c1_i32_7 = arith.constant 1 : i32
    scf.for %arg10 = %c0_i32_6 to %17 step %c1_i32_7  : i32 {
      %44 = arith.index_cast %arg10 : i32 to index
      %45 = memref.load %arg2[%44] : memref<8xi32, #tpu.memory_space<smem>>
      %46 = tpu.memref_slice %arg5[%45, %16] : memref<16x384xf32, #tpu.memory_space<any>> -> memref<1x384xf32, #tpu.memory_space<any>>
      %47 = tpu.memref_squeeze %46 : memref<1x384xf32, #tpu.memory_space<any>> -> memref<384xf32, #tpu.memory_space<any>>
      %c0_i32_30 = arith.constant 0 : i32
      %48 = tpu.memref_slice %arg8[%12, %arg10, %c0_i32_30] : memref<2x8x384xf32, #tpu.memory_space<vmem>> -> memref<1x1x384xf32, #tpu.memory_space<vmem>>
      %49 = tpu.memref_squeeze %48 : memref<1x1x384xf32, #tpu.memory_space<vmem>> -> memref<384xf32, #tpu.memory_space<vmem>>
      %50 = tpu.memref_slice %arg9[%12] : memref<2x!tpu.dma_semaphore, #tpu.memory_space<semaphore_mem>> -> memref<1x!tpu.dma_semaphore, #tpu.memory_space<semaphore_mem>>
      %51 = tpu.memref_squeeze %50 : memref<1x!tpu.dma_semaphore, #tpu.memory_space<semaphore_mem>> -> memref<!tpu.dma_semaphore, #tpu.memory_space<semaphore_mem>>
      tpu.wait_dma2 semaphore(%51 : memref<!tpu.dma_semaphore, #tpu.memory_space<semaphore_mem>>) src(%47 : memref<384xf32, #tpu.memory_space<any>>) dst(%49 : memref<384xf32, #tpu.memory_space<vmem>>)
    }
    %c8_i32_8 = arith.constant 8 : i32
    %c1_i32_9 = arith.constant 1 : i32
    %18 = arith.addi %arg1, %c1_i32_9 : i32
    %c1_i32_10 = arith.constant 1 : i32
    %19 = arith.cmpi slt, %18, %c1_i32_10 : i32
    %20 = arith.extui %19 : i1 to i32
    %c0_i32_11 = arith.constant 0 : i32
    %21 = arith.cmpi ne, %20, %c0_i32_11 : i32
    scf.if %21 {
      %c1_i32_30 = arith.constant 1 : i32
      %44 = arith.addi %arg1, %c1_i32_30 : i32
      %c1_i32_31 = arith.constant 1 : i32
      %45 = arith.subi %c1_i32_31, %12 : i32
      %c1_i32_32 = arith.constant 1 : i32
      %46 = arith.muli %arg0, %c1_i32_32 : i32
      %47 = arith.addi %46, %44 : i32
      %c384_i32_33 = arith.constant 384 : i32
      %48 = arith.muli %47, %c384_i32_33 : i32
      %49 = tpu.assume_multiple %48, 128 : i32
      %c0_i32_34 = arith.constant 0 : i32
      %c8_i32_35 = arith.constant 8 : i32
      %50 = arith.addi %c0_i32_34, %c8_i32_35 : i32
      %c1_i32_36 = arith.constant 1 : i32
      scf.for %arg10 = %c0_i32_34 to %50 step %c1_i32_36  : i32 {
        %51 = arith.index_cast %arg10 : i32 to index
        %52 = memref.load %arg2[%51] : memref<8xi32, #tpu.memory_space<smem>>
        %53 = tpu.memref_slice %arg5[%52, %49] : memref<16x384xf32, #tpu.memory_space<any>> -> memref<1x384xf32, #tpu.memory_space<any>>
        %54 = tpu.memref_squeeze %53 : memref<1x384xf32, #tpu.memory_space<any>> -> memref<384xf32, #tpu.memory_space<any>>
        %c0_i32_38 = arith.constant 0 : i32
        %55 = tpu.memref_slice %arg8[%45, %arg10, %c0_i32_38] : memref<2x8x384xf32, #tpu.memory_space<vmem>> -> memref<1x1x384xf32, #tpu.memory_space<vmem>>
        %56 = tpu.memref_squeeze %55 : memref<1x1x384xf32, #tpu.memory_space<vmem>> -> memref<384xf32, #tpu.memory_space<vmem>>
        %57 = tpu.memref_slice %arg9[%45] : memref<2x!tpu.dma_semaphore, #tpu.memory_space<semaphore_mem>> -> memref<1x!tpu.dma_semaphore, #tpu.memory_space<semaphore_mem>>
        %58 = tpu.memref_squeeze %57 : memref<1x!tpu.dma_semaphore, #tpu.memory_space<semaphore_mem>> -> memref<!tpu.dma_semaphore, #tpu.memory_space<semaphore_mem>>
        tpu.enqueue_dma source(%54 : memref<384xf32, #tpu.memory_space<any>>) target(%56 : memref<384xf32, #tpu.memory_space<vmem>>) target_semaphore(%58 : memref<!tpu.dma_semaphore, #tpu.memory_space<semaphore_mem>>)
      }
      %c8_i32_37 = arith.constant 8 : i32
    } else {
    }
    %c0 = arith.constant 0 : index
    %c0_12 = arith.constant 0 : index
    %22 = vector.load %arg4[%c0, %c0_12] : memref<32x384xf32, #tpu.memory_space<vmem>>, vector<32x384xf32>
    %c0_13 = arith.constant 0 : index
    %c0_14 = arith.constant 0 : index
    %23 = vector.load %arg3[%c0_13, %c0_14] : memref<8x32xf32, #tpu.memory_space<vmem>>, vector<8x32xf32>
    %24 = arith.index_cast %12 : i32 to index
    %c0_15 = arith.constant 0 : index
    %c0_16 = arith.constant 0 : index
    %25 = vector.load %arg8[%24, %c0_15, %c0_16] : memref<2x8x384xf32, #tpu.memory_space<vmem>>, vector<1x8x384xf32>
    %26 = vector.shape_cast %25 : vector<1x8x384xf32> to vector<8x384xf32>
    %cst = arith.constant dense<0.000000e+00> : vector<8x384xf32>
    %27 = tpu.matmul %23, %22, %cst {dimension_numbers = #tpu.dot_dimension_numbers<[1], [0], [0], [1], [0, 0, 1, 1], [], []>, precision = #tpu.contract_precision<fp32>} : vector<8x32xf32>, vector<32x384xf32>, vector<8x384xf32> -> vector<8x384xf32>
    %28 = arith.subf %27, %26 : vector<8x384xf32>
    %29 = arith.mulf %28, %28 : vector<8x384xf32>
    %30 = vector.extract_strided_slice %29 {offsets = [0, 0], sizes = [8, 128], strides = [1, 1]} : vector<8x384xf32> to vector<8x128xf32>
    %31 = vector.extract_strided_slice %29 {offsets = [0, 128], sizes = [8, 128], strides = [1, 1]} : vector<8x384xf32> to vector<8x128xf32>
    %32 = arith.addf %30, %31 : vector<8x128xf32>
    %33 = vector.extract_strided_slice %29 {offsets = [0, 256], sizes = [8, 128], strides = [1, 1]} : vector<8x384xf32> to vector<8x128xf32>
    %34 = arith.addf %32, %33 : vector<8x128xf32>
    %c0_17 = arith.constant 0 : index
    %c0_18 = arith.constant 0 : index
    %c0_19 = arith.constant 0 : index
    %35 = vector.load %arg6[%c0_17, %c0_18, %c0_19] : memref<1x8x128xf32, #tpu.memory_space<vmem>>, vector<1x8x128xf32>
    %36 = vector.shape_cast %34 : vector<8x128xf32> to vector<1x8x128xf32>
    %37 = arith.addf %35, %36 : vector<1x8x128xf32>
    %c0_20 = arith.constant 0 : index
    %c0_21 = arith.constant 0 : index
    %c0_22 = arith.constant 0 : index
    %38 = vector.load %arg6[%c0_20, %c0_21, %c0_22] : memref<1x8x128xf32, #tpu.memory_space<vmem>>, vector<1x8x128xf32>
    tpu.vector_store %arg6[%c0_20, %c0_21, %c0_22], %37 {strides = array<i32>} : memref<1x8x128xf32, #tpu.memory_space<vmem>>, vector<1x8x128xf32>,
    %c0_23 = arith.constant 0 : index
    %c0_24 = arith.constant 0 : index
    %c0_25 = arith.constant 0 : index
    %39 = vector.load %arg7[%c0_23, %c0_24, %c0_25] : memref<1x32x32xf32, #tpu.memory_space<vmem>>, vector<1x32x32xf32>
    %cst_26 = arith.constant dense<0.000000e+00> : vector<32x32xf32>
    %40 = tpu.matmul %22, %22, %cst_26 {dimension_numbers = #tpu.dot_dimension_numbers<[1], [1], [0], [0], [0, 0, 1, 0], [], []>, precision = #tpu.contract_precision<fp32>} : vector<32x384xf32>, vector<32x384xf32>, vector<32x32xf32> -> vector<32x32xf32>
    %41 = vector.shape_cast %40 : vector<32x32xf32> to vector<1x32x32xf32>
    %42 = arith.addf %39, %41 : vector<1x32x32xf32>
    %c0_27 = arith.constant 0 : index
    %c0_28 = arith.constant 0 : index
    %c0_29 = arith.constant 0 : index
    %43 = vector.load %arg7[%c0_27, %c0_28, %c0_29] : memref<1x32x32xf32, #tpu.memory_space<vmem>>, vector<1x32x32xf32>
    tpu.vector_store %arg7[%c0_27, %c0_28, %c0_29], %42 {strides = array<i32>} : memref<1x32x32xf32, #tpu.memory_space<vmem>>, vector<1x32x32xf32>,
    return
  }
  func.func @transform_0(%arg0: i32, %arg1: i32, %arg2: memref<8xi32, #tpu.memory_space<smem>>) -> (i32, i32) {
    %c0_i32 = arith.constant 0 : i32
    %c0_i32_0 = arith.constant 0 : i32
    %c0_i32_1 = arith.constant 0 : i32
    return %c0_i32, %c0_i32_0 : i32, i32
  }
  func.func @transform_1(%arg0: i32, %arg1: i32, %arg2: memref<8xi32, #tpu.memory_space<smem>>) -> (i32, i32) {
    %c1_i32 = arith.constant 1 : i32
    %0 = arith.muli %arg0, %c1_i32 : i32
    %1 = arith.addi %0, %arg1 : i32
    %c0_i32 = arith.constant 0 : i32
    %c0_i32_0 = arith.constant 0 : i32
    return %c0_i32, %1 : i32, i32
  }
  func.func @transform_3(%arg0: i32, %arg1: i32, %arg2: memref<8xi32, #tpu.memory_space<smem>>) -> (i32, i32, i32) {
    %c0_i32 = arith.constant 0 : i32
    %c0_i32_0 = arith.constant 0 : i32
    %c0_i32_1 = arith.constant 0 : i32
    return %arg0, %c0_i32, %c0_i32_0 : i32, i32, i32
  }
  func.func @transform_4(%arg0: i32, %arg1: i32, %arg2: memref<8xi32, #tpu.memory_space<smem>>) -> (i32, i32, i32) {
    %c0_i32 = arith.constant 0 : i32
    %c0_i32_0 = arith.constant 0 : i32
    %c0_i32_1 = arith.constant 0 : i32
    return %arg0, %c0_i32, %c0_i32_0 : i32, i32, i32
  }
}

</mosaic_0001>

<llo_original>
// kernel: tpu_custom_call.1
$region0: #{tpu_custom_call.1}
  #allocation0 [shape = 'u32[]', space=smem, size = 0x4, offset = 0x4, fixed_abs, tag = 'smem constant byte address 0x4 - core index']
  #allocation1 [shape = 'u32[144,128]{1,0:T(1,128)}', space=vmem, size = 0x12000, scoped, tag = 'internal scratch']
  #allocation2 [shape = 'f32[2,8,384]{2,1,0:T(8,128)}', space=vmem, size = 0x6000, scoped, tag = 'scratch operand']
  #allocation3 [shape = 's32[2]{0}', space=sflag, size = 0x8, scoped, tag = 'scratch operand']
  #allocation4 [shape = 's32[1]{0}', space=sflag, size = 0x4, scoped, tag = 'scoped memory for tpu_custom_call.1']
  #allocation5 [shape = 'u8[512]{0}', space=smem, size = 0x200, scoped, tag = 'prefetched SMEM operand 0']
  #allocation14 [shape = 's32[]', space=sflag, size = 0x4, offset = 0, fixed_abs, tag = 'sflag constant byte address 0x0 - dummy sync flag']
  #allocation15 [shape = 's32[]', space=sflag, size = 0x4, offset = 0, fixed_abs, tag = 'sflag constant byte address 0x0 - dummy sync flag']
  %s0 = inlined_call_operand.hbm [shape: s32[8], index: 0, kind: input, shape index: {}]
  %s1 = inlined_call_operand.hbm [shape: f32[8,32], index: 1, kind: input, shape index: {}]
  %s2 = inlined_call_operand.hbm [shape: f32[32,384], index: 2, kind: input, shape index: {}]
  %s3 = inlined_call_operand.hbm [shape: f32[16,384], index: 3, kind: input, shape index: {}]
  %s4 = inlined_call_operand.hbm [shape: f32[1,8,128], index: 4, kind: output, shape index: {0}]
  %s5 = inlined_call_operand.hbm [shape: f32[1,32,32], index: 5, kind: output, shape index: {1}]
  %6 = xla_tuple %s4, %s5
  %s7 = sld [smem:[#allocation0]]
  $region63: #{tpu_custom_call.1} parent=0
    _
  %s9 = ssub.s32 1, %s7
  %s10 = scalar_select 0, %s9, %s7
  %12 = dma.hbm_to_smem %s0, 16, [#allocation5], [#allocation4]
  %13 = dma.done [#allocation4], 16
  %14 = sfence
  $region1: #{tpu_custom_call.1} parent=0
    #allocation6 [shape = 'u8[4096]{0}', space=vmem, size = 0x1000, scoped, tag = 'input window, operand 1, single buffered']
    #allocation7 [shape = 's32[1]{0}', space=sflag, size = 0x4, scoped, tag = 'scoped memory for tpu_custom_call.1']
    #allocation8 [shape = 's32[1]{0}', space=sflag, size = 0x4, scoped, tag = 'scoped memory for tpu_custom_call.1']
    #allocation9 [shape = 'u8[49152]{0}', space=vmem, size = 0xc000, scoped, tag = 'input window, operand 2, single buffered']
    #allocation10 [shape = 's32[1]{0}', space=sflag, size = 0x4, scoped, tag = 'scoped memory for tpu_custom_call.1']
    #allocation11 [shape = 'u8[4096]{0}', space=vmem, size = 0x1000, scoped, tag = 'output window, operand 0, single buffered']
    #allocation12 [shape = 'u8[16384]{0}', space=vmem, size = 0x4000, scoped, tag = 'output window, operand 1, single buffered']
    #allocation13 [shape = 's32[1]{0}', space=sflag, size = 0x4, scoped, tag = 'scoped memory for tpu_custom_call.1']
    %15 = vsyncpa [#allocation7], 0
    %16 = vsyncpa [#allocation10], 0
    %17 = vsyncpa [#allocation8], 0
    %18 = vsyncpa [#allocation13], 0
    // Predicated region
    $region2: #{tpu_custom_call.1} parent=1 // pred_check
      _
    $region3: #{tpu_custom_call.1} parent=1 // pred_check_branch
      %20 = sbr.rel (0) target = $region5
    $region4: #{tpu_custom_call.1} parent=1 // pred_region
      %s22 = ssub.s32 128, 128
      %23 = vsyncadd [#allocation7], %s22
      %s25 = sshll.u32 [#allocation6], 4
      %s26 = int_to_ptr.vmem [resolvable:$true] %s25
      %28 = dma.hbm_to_vmem [thread:$0]  %s1, 128, %s26, [#allocation7]
    $region5: #{tpu_custom_call.1} parent=1 // pred_fallthru
      _
    // Predicated region
    $region6: #{tpu_custom_call.1} parent=1 // pred_check
      _
    $region7: #{tpu_custom_call.1} parent=1 // pred_check_branch
      %30 = sbr.rel (0) target = $region9
    $region8: #{tpu_custom_call.1} parent=1 // pred_region
      %s31 = sadd.s32 0, 0
      %s32 = smul.u32 3, %s31
      %s34 = ssub.s32 1536, 1536
      %35 = vsyncadd [#allocation10], %s34
      %s36 = smul.addr %s32, 128
      %s37 = scalar_lea.hbm %s2, %s36
      %s38 = sshll.u32 [#allocation9], 4
      %s39 = int_to_ptr.vmem [resolvable:$true] %s38
      %44 = dma.hbm_to_vmem [thread:$0]  %s37, 1536, %s39, [#allocation10], 384, 384, 24
    $region9: #{tpu_custom_call.1} parent=1 // pred_fallthru
      _
    // Predicated region
    $region10: #{tpu_custom_call.1} parent=1 // pred_check
      _
    $region11: #{tpu_custom_call.1} parent=1 // pred_check_branch
      %46 = sbr.rel (0) target = $region13
    $region12: #{tpu_custom_call.1} parent=1 // pred_region
      %47 = dma.done [#allocation7], 128
    $region13: #{tpu_custom_call.1} parent=1 // pred_fallthru
      _
    // Predicated region
    $region14: #{tpu_custom_call.1} parent=1 // pred_check
      _
    $region15: #{tpu_custom_call.1} parent=1 // pred_check_branch
      %49 = sbr.rel (0) target = $region17
    $region16: #{tpu_custom_call.1} parent=1 // pred_region
      %50 = dma.done [#allocation10], 1536
    $region17: #{tpu_custom_call.1} parent=1 // pred_fallthru
      _
    %s51 = sadd.s32 0, 0
    %s52 = smul.u32 3, %s51
    %p53 = scmp.eq.s32.totalorder 0, 0
    // Predicated region
    $region18: #{tpu_custom_call.1} parent=1 // pred_check
      %p54 = pneg %p53
    $region19: #{tpu_custom_call.1} parent=1 // pred_check_branch
      %56 = sbr.rel (%p54) target = $region21
    $region20: #{tpu_custom_call.1} parent=1 // pred_region
      %57 = vst [vmem:[#allocation11] sm:$0xff] 0.0
      %vm58 = vcmask 261120
      %59 = vst.msk [vmem:[#allocation12] sm:$0xff] %vm58, 0.0
      %60 = vst.msk [vmem:[#allocation12 + $0x8] sm:$0xff] %vm58, 0.0
      %61 = vst.msk [vmem:[#allocation12 + $0x10] sm:$0xff] %vm58, 0.0
      %62 = vst.msk [vmem:[#allocation12 + $0x18] sm:$0xff] %vm58, 0.0
      %s63 = smul.u32 0, 384
      loop: start=0, step=1, limit=8
      $region22: #{tpu_custom_call.1} parent=20 // loop_pre_header
        _
      $region23: #{tpu_custom_call.1} parent=20 // loop_header
        %s65 = sphi 0, %s69
        %p66 = scmp.ge.s32.totalorder %s65, 8
      $region24: #{tpu_custom_call.1} parent=20 // loop_header_branch
        %68 = sbr.rel (%p66) target = $region28
      $region25: #{tpu_custom_call.1} parent=20 // loop_body
        %s70 = sld [smem:[#allocation5 + %s65]]
        %s71 = sshrl.u32 %s70, 3
        %s72 = sand.u32 %s70, 7
        %s73 = smul.u32 %s71, 24
        %s74 = sadd.s32 %s72, %s73
        %s75 = sshra.s32 %s63, 7
        %s76 = sand.u32 %s63, 127
        %s77 = smul.u32 %s75, 8
        %s78 = sadd.s32 %s77, %s74
        %s79 = smul.addr %s78, 16
        %s80 = scalar_lea.hbm %s3, %s79
        %s81 = sshrl.u32 %s65, 3
        %s82 = sand.u32 %s65, 7
        %s83 = smul.u32 %s81, 24
        %s84 = sadd.s32 %s82, %s83
        %s85 = scalar_lea.vmem [#allocation2], %s84
        %s87 = sshll.u32 %s85, 4
        %s88 = int_to_ptr.vmem [resolvable:$true] %s87
        %90 = dma.hbm_to_vmem [thread:$0]  %s80, 48, %s88, [#allocation3], 128, 128, 1
      $region26: #{tpu_custom_call.1} parent=20 // loop_footer
        %s69 = sadd.s32 1, %s65
      $region27: #{tpu_custom_call.1} parent=20 // loop_footer_branch
        %64 = sbr.rel target = $region23
      $region28: #{tpu_custom_call.1} parent=20 // loop_exit
        _
    $region21: #{tpu_custom_call.1} parent=1 // pred_fallthru
      _
    %s91 = ssub.s32 0, 0
    %s92 = ssub.s32 0, 0
    %p93 = scmp.ne.s32.totalorder 0, 0
    %p94 = scmp.lt.s32.totalorder 0, 0
    %p95 = pnand %p94, %p93
    %p96 = pneg %p95
    %s97 = sadd.s32 0, 2
    %s98 = scalar_select %p96, %s97, 0
    %s99 = sadd.s32 0, 0
    %s100 = smul.u32 %s99, 384
    loop: start=0, step=1, limit=8
    $region29: #{tpu_custom_call.1} parent=1 // loop_pre_header
      _
    $region30: #{tpu_custom_call.1} parent=1 // loop_header
      %s102 = sphi 0, %s106
      %p103 = scmp.ge.s32.totalorder %s102, 8
    $region31: #{tpu_custom_call.1} parent=1 // loop_header_branch
      %105 = sbr.rel (%p103) target = $region35
    $region32: #{tpu_custom_call.1} parent=1 // loop_body
      %s107 = sld [smem:[#allocation5 + %s102]]
      %s108 = scalar_lea.sflag [#allocation3], %s98
      %110 = dma.done %s108, 48
    $region33: #{tpu_custom_call.1} parent=1 // loop_footer
      %s106 = sadd.s32 1, %s102
    $region34: #{tpu_custom_call.1} parent=1 // loop_footer_branch
      %101 = sbr.rel target = $region30
    $region35: #{tpu_custom_call.1} parent=1 // loop_exit
      _
    %s111 = sadd.s32 0, 1
    %p112 = scmp.lt.s32.totalorder %s111, 1
    // Predicated region
    $region36: #{tpu_custom_call.1} parent=1 // pred_check
      %p113 = pneg %p112
    $region37: #{tpu_custom_call.1} parent=1 // pred_check_branch
      %115 = sbr.rel (%p113) target = $region39
    $region38: #{tpu_custom_call.1} parent=1 // pred_region
      %s116 = ssub.s32 1, %s98
      %s117 = sadd.s32 0, %s111
      %s118 = smul.u32 %s117, 384
      loop: start=0, step=1, limit=8
      $region40: #{tpu_custom_call.1} parent=38 // loop_pre_header
        _
      $region41: #{tpu_custom_call.1} parent=38 // loop_header
        %s120 = sphi 0, %s124
        %p121 = scmp.ge.s32.totalorder %s120, 8
      $region42: #{tpu_custom_call.1} parent=38 // loop_header_branch
        %123 = sbr.rel (%p121) target = $region46
      $region43: #{tpu_custom_call.1} parent=38 // loop_body
        %s125 = sld [smem:[#allocation5 + %s120]]
        %s126 = sshrl.u32 %s125, 3
        %s127 = sand.u32 %s125, 7
        %s128 = smul.u32 %s126, 24
        %s129 = sadd.s32 %s127, %s128
        %s130 = sshra.s32 %s118, 7
        %s131 = sand.u32 %s118, 127
        %s132 = smul.u32 %s130, 8
        %s133 = sadd.s32 %s132, %s129
        %s134 = smul.addr %s133, 16
        %s135 = scalar_lea.hbm %s3, %s134
        %s136 = sshrl.u32 %s120, 3
        %s137 = sand.u32 %s120, 7
        %s138 = smul.u32 %s136, 24
        %s139 = sadd.s32 %s137, %s138
        %s140 = smul.u32 %s116, 24
        %s141 = sadd.s32 %s139, %s140
        %s142 = scalar_lea.vmem [#allocation2], %s141
        %s143 = scalar_lea.sflag [#allocation3], %s116
        %s145 = sshll.u32 %s142, 4
        %s146 = int_to_ptr.vmem [resolvable:$true] %s145
        %148 = dma.hbm_to_vmem [thread:$0]  %s135, 48, %s146, %s143, 128, 128, 1
      $region44: #{tpu_custom_call.1} parent=38 // loop_footer
        %s124 = sadd.s32 1, %s120
      $region45: #{tpu_custom_call.1} parent=38 // loop_footer_branch
        %119 = sbr.rel target = $region41
      $region46: #{tpu_custom_call.1} parent=38 // loop_exit
        _
    $region39: #{tpu_custom_call.1} parent=1 // pred_fallthru
      _
    %v149 = vld [vmem:[#allocation9] sm:$0xff]
    %v150 = vld [vmem:[#allocation9 + $0x8] sm:$0xff]
    %v151 = vld [vmem:[#allocation9 + $0x10] sm:$0xff]
    %v152 = vld [vmem:[#allocation9 + $0x18] sm:$0xff]
    %v153 = vld [vmem:[#allocation9 + $0x20] sm:$0xff]
    %v154 = vld [vmem:[#allocation9 + $0x28] sm:$0xff]
    %v155 = vld [vmem:[#allocation9 + $0x30] sm:$0xff]
    %v156 = vld [vmem:[#allocation9 + $0x38] sm:$0xff]
    %v157 = vld [vmem:[#allocation9 + $0x40] sm:$0xff]
    %v158 = vld [vmem:[#allocation9 + $0x48] sm:$0xff]
    %v159 = vld [vmem:[#allocation9 + $0x50] sm:$0xff]
    %v160 = vld [vmem:[#allocation9 + $0x58] sm:$0xff]
    %v161 = vld [vmem:[#allocation6] sm:$0xff]
    %s162 = smul.u32 %s98, 3
    %s163 = smul.addr %s162, 8
    %s164 = scalar_lea.vmem [#allocation2], %s163
    %v165 = vld [vmem:[%s164] sm:$0xff]
    %v166 = vld [vmem:[%s164 + $0x8] sm:$0xff]
    %v167 = vld [vmem:[%s164 + $0x10] sm:$0xff]
    %vm168 = vcmask 261120
    %v170 = vsel %vm168, %v161, 0
    %v172 = vand.u32 %v150, 4294901760
    %173 = vmatprep.subr.mxu0 %v172
    %v174 = vand.u32 %v149, 4294901760
    %175 = vmatpush1.msra.mxu0 %v174
    %v176 = vand.u32 %v153, 4294901760
    %177 = vmatprep.subr.mxu0 %v176
    %v178 = vand.u32 %v152, 4294901760
    %179 = vmatpush1.msra.mxu0 %v178
    %v180 = vand.u32 %v156, 4294901760
    %181 = vmatprep.subr.mxu0 %v180
    %v182 = vand.u32 %v155, 4294901760
    %183 = vmatpush1.msra.mxu0 %v182
    %v184 = vand.u32 %v159, 4294901760
    %185 = vmatprep.subr.mxu0 %v184
    %v186 = vand.u32 %v158, 4294901760
    %187 = vmatpush1.msra.mxu0 %v186
    %188 = vmatprep.subr.mxu0 0.0
    %189 = vmatpush1.msra.mxu0 0.0
    %190 = vmatprep.subr.mxu0 0.0
    %191 = vmatpush1.msra.mxu0 0.0
    %192 = vmatprep.subr.mxu0 0.0
    %193 = vmatpush1.msra.mxu0 0.0
    %194 = vmatprep.subr.mxu0 0.0
    %195 = vmatpush1.msra.mxu0 0.0
    %196 = vmatprep.subr.mxu0 0.0
    %197 = vmatpush1.msra.mxu0 0.0
    %198 = vmatprep.subr.mxu0 0.0
    %199 = vmatpush1.msra.mxu0 0.0
    %200 = vmatprep.subr.mxu0 0.0
    %201 = vmatpush1.msra.mxu0 0.0
    %202 = vmatprep.subr.mxu0 0.0
    %203 = vmatpush1.msra.mxu0 0.0
    %204 = vmatprep.subr.mxu0 0.0
    %205 = vmatpush1.msra.mxu0 0.0
    %206 = vmatprep.subr.mxu0 0.0
    %207 = vmatpush1.msra.mxu0 0.0
    %208 = vmatprep.subr.mxu0 0.0
    %209 = vmatpush1.msra.mxu0 0.0
    %210 = vmatprep.subr.mxu0 0.0
    %211 = vmatpush1.msra.mxu0 0.0
    %212 = vmatprep.subr.mxu0 0.0
    %213 = vmatpush1.msra.mxu0 0.0
    %214 = vmatprep.subr.mxu0 0.0
    %215 = vmatpush1.msra.mxu0 0.0
    %216 = vmatprep.subr.mxu0 0.0
    %217 = vmatpush1.msra.mxu0 0.0
    %218 = vmatprep.subr.mxu0 0.0
    %219 = vmatpush1.msra.mxu0 0.0
    %220 = vmatprep.subr.mxu0 0.0
    %221 = vmatpush1.msra.mxu0 0.0
    %222 = vmatprep.subr.mxu0 0.0
    %223 = vmatpush1.msra.mxu0 0.0
    %224 = vmatprep.subr.mxu0 0.0
    %225 = vmatpush1.msra.mxu0 0.0
    %226 = vmatprep.subr.mxu0 0.0
    %227 = vmatpush1.msra.mxu0 0.0
    %228 = vmatprep.subr.mxu0 0.0
    %229 = vmatpush1.msra.mxu0 0.0
    %230 = vmatprep.subr.mxu0 0.0
    %231 = vmatpush1.msra.mxu0 0.0
    %232 = vmatprep.subr.mxu0 0.0
    %233 = vmatpush1.msra.mxu0 0.0
    %234 = vmatprep.subr.mxu0 0.0
    %235 = vmatpush1.msra.mxu0 0.0
    %236 = vmatprep.subr.mxu0 0.0
    %237 = vmatpush1.msra.mxu0 0.0
    %238 = vmatprep.subr.mxu0 0.0
    %239 = vmatpush1.msra.mxu0 0.0
    %240 = vmatprep.subr.mxu0 0.0
    %241 = vmatpush1.msra.mxu0 0.0
    %242 = vmatprep.subr.mxu0 0.0
    %243 = vmatpush1.msra.mxu0 0.0
    %244 = vmatprep.mubr.f32.mxu0 0.0
    %v245 = vand.u32 %v170, 4294901760
    %v246 = vsub.f32 %v170, %v245
    %v247 = vand.u32 %v246, 4294901760
    %v248 = vsub.f32 %v246, %v247
    %v249 = vand.u32 %v248, 4294901760
    %250 = vmatmul.mubr.f32.gmra.mrb[0].mxu0 %v249
    %v251 = vpop.f32.mrb[0].mxu0
    %v252 = vadd.f32 0.0, %v251
    %v253 = vpop.f32.mrb[0].mxu0
    %v254 = vadd.f32 0.0, %v253
    %255 = vdwg.mxu0
    %v256 = vand.u32 %v150, 4294901760
    %v257 = vsub.f32 %v150, %v256
    %v258 = vand.u32 %v257, 4294901760
    %v259 = vsub.f32 %v257, %v258
    %v260 = vand.u32 %v259, 4294901760
    %261 = vmatprep.subr.mxu0 %v260
    %v262 = vand.u32 %v149, 4294901760
    %v263 = vsub.f32 %v149, %v262
    %v264 = vand.u32 %v263, 4294901760
    %v265 = vsub.f32 %v263, %v264
    %v266 = vand.u32 %v265, 4294901760
    %267 = vmatpush1.msra.mxu0 %v266
    %v268 = vand.u32 %v153, 4294901760
    %v269 = vsub.f32 %v153, %v268
    %v270 = vand.u32 %v269, 4294901760
    %v271 = vsub.f32 %v269, %v270
    %v272 = vand.u32 %v271, 4294901760
    %273 = vmatprep.subr.mxu0 %v272
    %v274 = vand.u32 %v152, 4294901760
    %v275 = vsub.f32 %v152, %v274
    %v276 = vand.u32 %v275, 4294901760
    %v277 = vsub.f32 %v275, %v276
    %v278 = vand.u32 %v277, 4294901760
    %279 = vmatpush1.msra.mxu0 %v278
    %v280 = vand.u32 %v156, 4294901760
    %v281 = vsub.f32 %v156, %v280
    %v282 = vand.u32 %v281, 4294901760
    %v283 = vsub.f32 %v281, %v282
    %v284 = vand.u32 %v283, 4294901760
    %285 = vmatprep.subr.mxu0 %v284
    %v286 = vand.u32 %v155, 4294901760
    %v287 = vsub.f32 %v155, %v286
    %v288 = vand.u32 %v287, 4294901760
    %v289 = vsub.f32 %v287, %v288
    %v290 = vand.u32 %v289, 4294901760
    %291 = vmatpush1.msra.mxu0 %v290
    %v292 = vand.u32 %v159, 4294901760
    %v293 = vsub.f32 %v159, %v292
    %v294 = vand.u32 %v293, 4294901760
    %v295 = vsub.f32 %v293, %v294
    %v296 = vand.u32 %v295, 4294901760
    %297 = vmatprep.subr.mxu0 %v296
    %v298 = vand.u32 %v158, 4294901760
    %v299 = vsub.f32 %v158, %v298
    %v300 = vand.u32 %v299, 4294901760
    %v301 = vsub.f32 %v299, %v300
    %v302 = vand.u32 %v301, 4294901760
    %303 = vmatpush1.msra.mxu0 %v302
    %304 = vmatprep.subr.mxu0 0.0
    %305 = vmatpush1.msra.mxu0 0.0
    %306 = vmatprep.subr.mxu0 0.0
    %307 = vmatpush1.msra.mxu0 0.0
    %308 = vmatprep.subr.mxu0 0.0
    %309 = vmatpush1.msra.mxu0 0.0
    %310 = vmatprep.subr.mxu0 0.0
    %311 = vmatpush1.msra.mxu0 0.0
    %312 = vmatprep.subr.mxu0 0.0
    %313 = vmatpush1.msra.mxu0 0.0
    %314 = vmatprep.subr.mxu0 0.0
    %315 = vmatpush1.msra.mxu0 0.0
    %316 = vmatprep.subr.mxu0 0.0
    %317 = vmatpush1.msra.mxu0 0.0
    %318 = vmatprep.subr.mxu0 0.0
    %319 = vmatpush1.msra.mxu0 0.0
    %320 = vmatprep.subr.mxu0 0.0
    %321 = vmatpush1.msra.mxu0 0.0
    %322 = vmatprep.subr.mxu0 0.0
    %323 = vmatpush1.msra.mxu0 0.0
    %324 = vmatprep.subr.mxu0 0.0
    %325 = vmatpush1.msra.mxu0 0.0
    %326 = vmatprep.subr.mxu0 0.0
    %327 = vmatpush1.msra.mxu0 0.0
    %328 = vmatprep.subr.mxu0 0.0
    %329 = vmatpush1.msra.mxu0 0.0
    %330 = vmatprep.subr.mxu0 0.0
    %331 = vmatpush1.msra.mxu0 0.0
    %332 = vmatprep.subr.mxu0 0.0
    %333 = vmatpush1.msra.mxu0 0.0
    %334 = vmatprep.subr.mxu0 0.0
    %335 = vmatpush1.msra.mxu0 0.0
    %336 = vmatprep.subr.mxu0 0.0
    %337 = vmatpush1.msra.mxu0 0.0
    %338 = vmatprep.subr.mxu0 0.0
    %339 = vmatpush1.msra.mxu0 0.0
    %340 = vmatprep.subr.mxu0 0.0
    %341 = vmatpush1.msra.mxu0 0.0
    %342 = vmatprep.subr.mxu0 0.0
    %343 = vmatpush1.msra.mxu0 0.0
    %344 = vmatprep.subr.mxu0 0.0
    %345 = vmatpush1.msra.mxu0 0.0
    %346 = vmatprep.subr.mxu0 0.0
    %347 = vmatpush1.msra.mxu0 0.0
    %348 = vmatprep.subr.mxu0 0.0
    %349 = vmatpush1.msra.mxu0 0.0
    %350 = vmatprep.subr.mxu0 0.0
    %351 = vmatpush1.msra.mxu0 0.0
    %352 = vmatprep.subr.mxu0 0.0
    %353 = vmatpush1.msra.mxu0 0.0
    %354 = vmatprep.subr.mxu0 0.0
    %355 = vmatpush1.msra.mxu0 0.0
    %356 = vmatprep.subr.mxu0 0.0
    %357 = vmatpush1.msra.mxu0 0.0
    %358 = vmatprep.subr.mxu0 0.0
    %359 = vmatpush1.msra.mxu0 0.0
    %360 = vmatprep.mubr.f32.mxu0 0.0
    %v361 = vand.u32 %v170, 4294901760
    %362 = vmatmul.mubr.f32.gmra.mrb[0].mxu0 %v361
    %v363 = vpop.f32.mrb[0].mxu0
    %v364 = vadd.f32 %v252, %v363
    %v365 = vpop.f32.mrb[0].mxu0
    %v366 = vadd.f32 %v254, %v365
    %367 = vdwg.mxu0
    %v368 = vand.u32 %v150, 4294901760
    %v369 = vsub.f32 %v150, %v368
    %370 = vmatprep.subr.mxu0 %v369
    %v371 = vand.u32 %v149, 4294901760
    %v372 = vsub.f32 %v149, %v371
    %373 = vmatpush1.msra.mxu0 %v372
    %v374 = vand.u32 %v153, 4294901760
    %v375 = vsub.f32 %v153, %v374
    %376 = vmatprep.subr.mxu0 %v375
    %v377 = vand.u32 %v152, 4294901760
    %v378 = vsub.f32 %v152, %v377
    %379 = vmatpush1.msra.mxu0 %v378
    %v380 = vand.u32 %v156, 4294901760
    %v381 = vsub.f32 %v156, %v380
    %382 = vmatprep.subr.mxu0 %v381
    %v383 = vand.u32 %v155, 4294901760
    %v384 = vsub.f32 %v155, %v383
    %385 = vmatpush1.msra.mxu0 %v384
    %v386 = vand.u32 %v159, 4294901760
    %v387 = vsub.f32 %v159, %v386
    %388 = vmatprep.subr.mxu0 %v387
    %v389 = vand.u32 %v158, 4294901760
    %v390 = vsub.f32 %v158, %v389
    %391 = vmatpush1.msra.mxu0 %v390
    %392 = vmatprep.subr.mxu0 0.0
    %393 = vmatpush1.msra.mxu0 0.0
    %394 = vmatprep.subr.mxu0 0.0
    %395 = vmatpush1.msra.mxu0 0.0
    %396 = vmatprep.subr.mxu0 0.0
    %397 = vmatpush1.msra.mxu0 0.0
    %398 = vmatprep.subr.mxu0 0.0
    %399 = vmatpush1.msra.mxu0 0.0
    %400 = vmatprep.subr.mxu0 0.0
    %401 = vmatpush1.msra.mxu0 0.0
    %402 = vmatprep.subr.mxu0 0.0
    %403 = vmatpush1.msra.mxu0 0.0
    %404 = vmatprep.subr.mxu0 0.0
    %405 = vmatpush1.msra.mxu0 0.0
    %406 = vmatprep.subr.mxu0 0.0
    %407 = vmatpush1.msra.mxu0 0.0
    %408 = vmatprep.subr.mxu0 0.0
    %409 = vmatpush1.msra.mxu0 0.0
    %410 = vmatprep.subr.mxu0 0.0
    %411 = vmatpush1.msra.mxu0 0.0
    %412 = vmatprep.subr.mxu0 0.0
    %413 = vmatpush1.msra.mxu0 0.0
    %414 = vmatprep.subr.mxu0 0.0
    %415 = vmatpush1.msra.mxu0 0.0
    %416 = vmatprep.subr.mxu0 0.0
    %417 = vmatpush1.msra.mxu0 0.0
    %418 = vmatprep.subr.mxu0 0.0
    %419 = vmatpush1.msra.mxu0 0.0
    %420 = vmatprep.subr.mxu0 0.0
    %421 = vmatpush1.msra.mxu0 0.0
    %422 = vmatprep.subr.mxu0 0.0
    %423 = vmatpush1.msra.mxu0 0.0
    %424 = vmatprep.subr.mxu0 0.0
    %425 = vmatpush1.msra.mxu0 0.0
    %426 = vmatprep.subr.mxu0 0.0
    %427 = vmatpush1.msra.mxu0 0.0
    %428 = vmatprep.subr.mxu0 0.0
    %429 = vmatpush1.msra.mxu0 0.0
    %430 = vmatprep.subr.mxu0 0.0
    %431 = vmatpush1.msra.mxu0 0.0
    %432 = vmatprep.subr.mxu0 0.0
    %433 = vmatpush1.msra.mxu0 0.0
    %434 = vmatprep.subr.mxu0 0.0
    %435 = vmatpush1.msra.mxu0 0.0
    %436 = vmatprep.subr.mxu0 0.0
    %437 = vmatpush1.msra.mxu0 0.0
    %438 = vmatprep.subr.mxu0 0.0
    %439 = vmatpush1.msra.mxu0 0.0
    %440 = vmatprep.subr.mxu0 0.0
    %441 = vmatpush1.msra.mxu0 0.0
    %442 = vmatprep.subr.mxu0 0.0
    %443 = vmatpush1.msra.mxu0 0.0
    %444 = vmatprep.subr.mxu0 0.0
    %445 = vmatpush1.msra.mxu0 0.0
    %446 = vmatprep.subr.mxu0 0.0
    %447 = vmatpush1.msra.mxu0 0.0
    %448 = vmatprep.mubr.f32.mxu0 0.0
    %v449 = vand.u32 %v170, 4294901760
    %v450 = vsub.f32 %v170, %v449
    %451 = vmatmul.mubr.f32.gmra.mrb[0].mxu0 %v450
    %v452 = vpop.f32.mrb[0].mxu0
    %v453 = vadd.f32 %v364, %v452
    %v454 = vpop.f32.mrb[0].mxu0
    %v455 = vadd.f32 %v366, %v454
    %456 = vdwg.mxu0
    %v457 = vand.u32 %v150, 4294901760
    %458 = vmatprep.subr.mxu0 %v457
    %v459 = vand.u32 %v149, 4294901760
    %460 = vmatpush1.msra.mxu0 %v459
    %v461 = vand.u32 %v153, 4294901760
    %462 = vmatprep.subr.mxu0 %v461
    %v463 = vand.u32 %v152, 4294901760
    %464 = vmatpush1.msra.mxu0 %v463
    %v465 = vand.u32 %v156, 4294901760
    %466 = vmatprep.subr.mxu0 %v465
    %v467 = vand.u32 %v155, 4294901760
    %468 = vmatpush1.msra.mxu0 %v467
    %v469 = vand.u32 %v159, 4294901760
    %470 = vmatprep.subr.mxu0 %v469
    %v471 = vand.u32 %v158, 4294901760
    %472 = vmatpush1.msra.mxu0 %v471
    %473 = vmatprep.subr.mxu0 0.0
    %474 = vmatpush1.msra.mxu0 0.0
    %475 = vmatprep.subr.mxu0 0.0
    %476 = vmatpush1.msra.mxu0 0.0
    %477 = vmatprep.subr.mxu0 0.0
    %478 = vmatpush1.msra.mxu0 0.0
    %479 = vmatprep.subr.mxu0 0.0
    %480 = vmatpush1.msra.mxu0 0.0
    %481 = vmatprep.subr.mxu0 0.0
    %482 = vmatpush1.msra.mxu0 0.0
    %483 = vmatprep.subr.mxu0 0.0
    %484 = vmatpush1.msra.mxu0 0.0
    %485 = vmatprep.subr.mxu0 0.0
    %486 = vmatpush1.msra.mxu0 0.0
    %487 = vmatprep.subr.mxu0 0.0
    %488 = vmatpush1.msra.mxu0 0.0
    %489 = vmatprep.subr.mxu0 0.0
    %490 = vmatpush1.msra.mxu0 0.0
    %491 = vmatprep.subr.mxu0 0.0
    %492 = vmatpush1.msra.mxu0 0.0
    %493 = vmatprep.subr.mxu0 0.0
    %494 = vmatpush1.msra.mxu0 0.0
    %495 = vmatprep.subr.mxu0 0.0
    %496 = vmatpush1.msra.mxu0 0.0
    %497 = vmatprep.subr.mxu0 0.0
    %498 = vmatpush1.msra.mxu0 0.0
    %499 = vmatprep.subr.mxu0 0.0
    %500 = vmatpush1.msra.mxu0 0.0
    %501 = vmatprep.subr.mxu0 0.0
    %502 = vmatpush1.msra.mxu0 0.0
    %503 = vmatprep.subr.mxu0 0.0
    %504 = vmatpush1.msra.mxu0 0.0
    %505 = vmatprep.subr.mxu0 0.0
    %506 = vmatpush1.msra.mxu0 0.0
    %507 = vmatprep.subr.mxu0 0.0
    %508 = vmatpush1.msra.mxu0 0.0
    %509 = vmatprep.subr.mxu0 0.0
    %510 = vmatpush1.msra.mxu0 0.0
    %511 = vmatprep.subr.mxu0 0.0
    %512 = vmatpush1.msra.mxu0 0.0
    %513 = vmatprep.subr.mxu0 0.0
    %514 = vmatpush1.msra.mxu0 0.0
    %515 = vmatprep.subr.mxu0 0.0
    %516 = vmatpush1.msra.mxu0 0.0
    %517 = vmatprep.subr.mxu0 0.0
    %518 = vmatpush1.msra.mxu0 0.0
    %519 = vmatprep.subr.mxu0 0.0
    %520 = vmatpush1.msra.mxu0 0.0
    %521 = vmatprep.subr.mxu0 0.0
    %522 = vmatpush1.msra.mxu0 0.0
    %523 = vmatprep.subr.mxu0 0.0
    %524 = vmatpush1.msra.mxu0 0.0
    %525 = vmatprep.subr.mxu0 0.0
    %526 = vmatpush1.msra.mxu0 0.0
    %527 = vmatprep.subr.mxu0 0.0
    %528 = vmatpush1.msra.mxu0 0.0
    %529 = vmatprep.mubr.f32.mxu0 0.0
    %v530 = vand.u32 %v170, 4294901760
    %v531 = vsub.f32 %v170, %v530
    %v532 = vand.u32 %v531, 4294901760
    %533 = vmatmul.mubr.f32.gmra.mrb[0].mxu0 %v532
    %v534 = vpop.f32.mrb[0].mxu0
    %v535 = vadd.f32 %v453, %v534
    %v536 = vpop.f32.mrb[0].mxu0
    %v537 = vadd.f32 %v455, %v536
    %538 = vdwg.mxu0
    %v539 = vand.u32 %v150, 4294901760
    %v540 = vsub.f32 %v150, %v539
    %v541 = vand.u32 %v540, 4294901760
    %542 = vmatprep.subr.mxu0 %v541
    %v543 = vand.u32 %v149, 4294901760
    %v544 = vsub.f32 %v149, %v543
    %v545 = vand.u32 %v544, 4294901760
    %546 = vmatpush1.msra.mxu0 %v545
    %v547 = vand.u32 %v153, 4294901760
    %v548 = vsub.f32 %v153, %v547
    %v549 = vand.u32 %v548, 4294901760
    %550 = vmatprep.subr.mxu0 %v549
    %v551 = vand.u32 %v152, 4294901760
    %v552 = vsub.f32 %v152, %v551
    %v553 = vand.u32 %v552, 4294901760
    %554 = vmatpush1.msra.mxu0 %v553
    %v555 = vand.u32 %v156, 4294901760
    %v556 = vsub.f32 %v156, %v555
    %v557 = vand.u32 %v556, 4294901760
    %558 = vmatprep.subr.mxu0 %v557
    %v559 = vand.u32 %v155, 4294901760
    %v560 = vsub.f32 %v155, %v559
    %v561 = vand.u32 %v560, 4294901760
    %562 = vmatpush1.msra.mxu0 %v561
    %v563 = vand.u32 %v159, 4294901760
    %v564 = vsub.f32 %v159, %v563
    %v565 = vand.u32 %v564, 4294901760
    %566 = vmatprep.subr.mxu0 %v565
    %v567 = vand.u32 %v158, 4294901760
    %v568 = vsub.f32 %v158, %v567
    %v569 = vand.u32 %v568, 4294901760
    %570 = vmatpush1.msra.mxu0 %v569
    %571 = vmatprep.subr.mxu0 0.0
    %572 = vmatpush1.msra.mxu0 0.0
    %573 = vmatprep.subr.mxu0 0.0
    %574 = vmatpush1.msra.mxu0 0.0
    %575 = vmatprep.subr.mxu0 0.0
    %576 = vmatpush1.msra.mxu0 0.0
    %577 = vmatprep.subr.mxu0 0.0
    %578 = vmatpush1.msra.mxu0 0.0
    %579 = vmatprep.subr.mxu0 0.0
    %580 = vmatpush1.msra.mxu0 0.0
    %581 = vmatprep.subr.mxu0 0.0
    %582 = vmatpush1.msra.mxu0 0.0
    %583 = vmatprep.subr.mxu0 0.0
    %584 = vmatpush1.msra.mxu0 0.0
    %585 = vmatprep.subr.mxu0 0.0
    %586 = vmatpush1.msra.mxu0 0.0
    %587 = vmatprep.subr.mxu0 0.0
    %588 = vmatpush1.msra.mxu0 0.0
    %589 = vmatprep.subr.mxu0 0.0
    %590 = vmatpush1.msra.mxu0 0.0
    %591 = vmatprep.subr.mxu0 0.0
    %592 = vmatpush1.msra.mxu0 0.0
    %593 = vmatprep.subr.mxu0 0.0
    %594 = vmatpush1.msra.mxu0 0.0
    %595 = vmatprep.subr.mxu0 0.0
    %596 = vmatpush1.msra.mxu0 0.0
    %597 = vmatprep.subr.mxu0 0.0
    %598 = vmatpush1.msra.mxu0 0.0
    %599 = vmatprep.subr.mxu0 0.0
    %600 = vmatpush1.msra.mxu0 0.0
    %601 = vmatprep.subr.mxu0 0.0
    %602 = vmatpush1.msra.mxu0 0.0
    %603 = vmatprep.subr.mxu0 0.0
    %604 = vmatpush1.msra.mxu0 0.0
    %605 = vmatprep.subr.mxu0 0.0
    %606 = vmatpush1.msra.mxu0 0.0
    %607 = vmatprep.subr.mxu0 0.0
    %608 = vmatpush1.msra.mxu0 0.0
    %609 = vmatprep.subr.mxu0 0.0
    %610 = vmatpush1.msra.mxu0 0.0
    %611 = vmatprep.subr.mxu0 0.0
    %612 = vmatpush1.msra.mxu0 0.0
    %613 = vmatprep.subr.mxu0 0.0
    %614 = vmatpush1.msra.mxu0 0.0
    %615 = vmatprep.subr.mxu0 0.0
    %616 = vmatpush1.msra.mxu0 0.0
    %617 = vmatprep.subr.mxu0 0.0
    %618 = vmatpush1.msra.mxu0 0.0
    %619 = vmatprep.subr.mxu0 0.0
    %620 = vmatpush1.msra.mxu0 0.0
    %621 = vmatprep.subr.mxu0 0.0
    %622 = vmatpush1.msra.mxu0 0.0
    %623 = vmatprep.subr.mxu0 0.0
    %624 = vmatpush1.msra.mxu0 0.0
    %625 = vmatprep.subr.mxu0 0.0
    %626 = vmatpush1.msra.mxu0 0.0
    %627 = vmatprep.mubr.f32.mxu0 0.0
    %v628 = vand.u32 %v170, 4294901760
    %629 = vmatmul.mubr.f32.gmra.mrb[0].mxu0 %v628
    %v630 = vpop.f32.mrb[0].mxu0
    %v631 = vadd.f32 %v535, %v630
    %v632 = vpop.f32.mrb[0].mxu0
    %v633 = vadd.f32 %v537, %v632
    %634 = vdwg.mxu0
    %v635 = vand.u32 %v150, 4294901760
    %636 = vmatprep.subr.mxu0 %v635
    %v637 = vand.u32 %v149, 4294901760
    %638 = vmatpush1.msra.mxu0 %v637
    %v639 = vand.u32 %v153, 4294901760
    %640 = vmatprep.subr.mxu0 %v639
    %v641 = vand.u32 %v152, 4294901760
    %642 = vmatpush1.msra.mxu0 %v641
    %v643 = vand.u32 %v156, 4294901760
    %644 = vmatprep.subr.mxu0 %v643
    %v645 = vand.u32 %v155, 4294901760
    %646 = vmatpush1.msra.mxu0 %v645
    %v647 = vand.u32 %v159, 4294901760
    %648 = vmatprep.subr.mxu0 %v647
    %v649 = vand.u32 %v158, 4294901760
    %650 = vmatpush1.msra.mxu0 %v649
    %651 = vmatprep.subr.mxu0 0.0
    %652 = vmatpush1.msra.mxu0 0.0
    %653 = vmatprep.subr.mxu0 0.0
    %654 = vmatpush1.msra.mxu0 0.0
    %655 = vmatprep.subr.mxu0 0.0
    %656 = vmatpush1.msra.mxu0 0.0
    %657 = vmatprep.subr.mxu0 0.0
    %658 = vmatpush1.msra.mxu0 0.0
    %659 = vmatprep.subr.mxu0 0.0
    %660 = vmatpush1.msra.mxu0 0.0
    %661 = vmatprep.subr.mxu0 0.0
    %662 = vmatpush1.msra.mxu0 0.0
    %663 = vmatprep.subr.mxu0 0.0
    %664 = vmatpush1.msra.mxu0 0.0
    %665 = vmatprep.subr.mxu0 0.0
    %666 = vmatpush1.msra.mxu0 0.0
    %667 = vmatprep.subr.mxu0 0.0
    %668 = vmatpush1.msra.mxu0 0.0
    %669 = vmatprep.subr.mxu0 0.0
    %670 = vmatpush1.msra.mxu0 0.0
    %671 = vmatprep.subr.mxu0 0.0
    %672 = vmatpush1.msra.mxu0 0.0
    %673 = vmatprep.subr.mxu0 0.0
    %674 = vmatpush1.msra.mxu0 0.0
    %675 = vmatprep.subr.mxu0 0.0
    %676 = vmatpush1.msra.mxu0 0.0
    %677 = vmatprep.subr.mxu0 0.0
    %678 = vmatpush1.msra.mxu0 0.0
    %679 = vmatprep.subr.mxu0 0.0
    %680 = vmatpush1.msra.mxu0 0.0
    %681 = vmatprep.subr.mxu0 0.0
    %682 = vmatpush1.msra.mxu0 0.0
    %683 = vmatprep.subr.mxu0 0.0
    %684 = vmatpush1.msra.mxu0 0.0
    %685 = vmatprep.subr.mxu0 0.0
    %686 = vmatpush1.msra.mxu0 0.0
    %687 = vmatprep.subr.mxu0 0.0
    %688 = vmatpush1.msra.mxu0 0.0
    %689 = vmatprep.subr.mxu0 0.0
    %690 = vmatpush1.msra.mxu0 0.0
    %691 = vmatprep.subr.mxu0 0.0
    %692 = vmatpush1.msra.mxu0 0.0
    %693 = vmatprep.subr.mxu0 0.0
    %694 = vmatpush1.msra.mxu0 0.0
    %695 = vmatprep.subr.mxu0 0.0
    %696 = vmatpush1.msra.mxu0 0.0
    %697 = vmatprep.subr.mxu0 0.0
    %698 = vmatpush1.msra.mxu0 0.0
    %699 = vmatprep.subr.mxu0 0.0
    %700 = vmatpush1.msra.mxu0 0.0
    %701 = vmatprep.subr.mxu0 0.0
    %702 = vmatpush1.msra.mxu0 0.0
    %703 = vmatprep.subr.mxu0 0.0
    %704 = vmatpush1.msra.mxu0 0.0
    %705 = vmatprep.subr.mxu0 0.0
    %706 = vmatpush1.msra.mxu0 0.0
    %707 = vmatprep.mubr.f32.mxu0 0.0
    %v708 = vand.u32 %v170, 4294901760
    %709 = vmatmul.mubr.f32.gmra.mrb[0].mxu0 %v708
    %v710 = vpop.f32.mrb[0].mxu0
    %v711 = vadd.f32 %v631, %v710
    %v712 = vpop.f32.mrb[0].mxu0
    %v713 = vadd.f32 %v633, %v712
    %714 = vdwg.mxu0
    %715 = vmatprep.subr.mxu0 0.0
    %v716 = vand.u32 %v151, 4294901760
    %717 = vmatpush1.msra.mxu0 %v716
    %718 = vmatprep.subr.mxu0 0.0
    %v719 = vand.u32 %v154, 4294901760
    %720 = vmatpush1.msra.mxu0 %v719
    %721 = vmatprep.subr.mxu0 0.0
    %v722 = vand.u32 %v157, 4294901760
    %723 = vmatpush1.msra.mxu0 %v722
    %724 = vmatprep.subr.mxu0 0.0
    %v725 = vand.u32 %v160, 4294901760
    %726 = vmatpush1.msra.mxu0 %v725
    %727 = vmatprep.subr.mxu0 0.0
    %728 = vmatpush1.msra.mxu0 0.0
    %729 = vmatprep.subr.mxu0 0.0
    %730 = vmatpush1.msra.mxu0 0.0
    %731 = vmatprep.subr.mxu0 0.0
    %732 = vmatpush1.msra.mxu0 0.0
    %733 = vmatprep.subr.mxu0 0.0
    %734 = vmatpush1.msra.mxu0 0.0
    %735 = vmatprep.subr.mxu0 0.0
    %736 = vmatpush1.msra.mxu0 0.0
    %737 = vmatprep.subr.mxu0 0.0
    %738 = vmatpush1.msra.mxu0 0.0
    %739 = vmatprep.subr.mxu0 0.0
    %740 = vmatpush1.msra.mxu0 0.0
    %741 = vmatprep.subr.mxu0 0.0
    %742 = vmatpush1.msra.mxu0 0.0
    %743 = vmatprep.subr.mxu0 0.0
    %744 = vmatpush1.msra.mxu0 0.0
    %745 = vmatprep.subr.mxu0 0.0
    %746 = vmatpush1.msra.mxu0 0.0
    %747 = vmatprep.subr.mxu0 0.0
    %748 = vmatpush1.msra.mxu0 0.0
    %749 = vmatprep.subr.mxu0 0.0
    %750 = vmatpush1.msra.mxu0 0.0
    %751 = vmatprep.subr.mxu0 0.0
    %752 = vmatpush1.msra.mxu0 0.0
    %753 = vmatprep.subr.mxu0 0.0
    %754 = vmatpush1.msra.mxu0 0.0
    %755 = vmatprep.subr.mxu0 0.0
    %756 = vmatpush1.msra.mxu0 0.0
    %757 = vmatprep.subr.mxu0 0.0
    %758 = vmatpush1.msra.mxu0 0.0
    %759 = vmatprep.subr.mxu0 0.0
    %760 = vmatpush1.msra.mxu0 0.0
    %761 = vmatprep.subr.mxu0 0.0
    %762 = vmatpush1.msra.mxu0 0.0
    %763 = vmatprep.subr.mxu0 0.0
    %764 = vmatpush1.msra.mxu0 0.0
    %765 = vmatprep.subr.mxu0 0.0
    %766 = vmatpush1.msra.mxu0 0.0
    %767 = vmatprep.subr.mxu0 0.0
    %768 = vmatpush1.msra.mxu0 0.0
    %769 = vmatprep.subr.mxu0 0.0
    %770 = vmatpush1.msra.mxu0 0.0
    %771 = vmatprep.subr.mxu0 0.0
    %772 = vmatpush1.msra.mxu0 0.0
    %773 = vmatprep.subr.mxu0 0.0
    %774 = vmatpush1.msra.mxu0 0.0
    %775 = vmatprep.subr.mxu0 0.0
    %776 = vmatpush1.msra.mxu0 0.0
    %777 = vmatprep.subr.mxu0 0.0
    %778 = vmatpush1.msra.mxu0 0.0
    %779 = vmatprep.subr.mxu0 0.0
    %780 = vmatpush1.msra.mxu0 0.0
    %781 = vmatprep.subr.mxu0 0.0
    %782 = vmatpush1.msra.mxu0 0.0
    %783 = vmatprep.mubr.f32.mxu0 0.0
    %v784 = vand.u32 %v170, 4294901760
    %v785 = vsub.f32 %v170, %v784
    %v786 = vand.u32 %v785, 4294901760
    %v787 = vsub.f32 %v785, %v786
    %v788 = vand.u32 %v787, 4294901760
    %789 = vmatmul.mubr.f32.gmra.mrb[0].mxu0 %v788
    %v790 = vpop.f32.mrb[0].mxu0
    %v791 = vadd.f32 0.0, %v790
    %v792 = vpop.f32.mrb[0].mxu0
    %793 = vdwg.mxu0
    %794 = vmatprep.subr.mxu0 0.0
    %v795 = vand.u32 %v151, 4294901760
    %v796 = vsub.f32 %v151, %v795
    %v797 = vand.u32 %v796, 4294901760
    %v798 = vsub.f32 %v796, %v797
    %v799 = vand.u32 %v798, 4294901760
    %800 = vmatpush1.msra.mxu0 %v799
    %801 = vmatprep.subr.mxu0 0.0
    %v802 = vand.u32 %v154, 4294901760
    %v803 = vsub.f32 %v154, %v802
    %v804 = vand.u32 %v803, 4294901760
    %v805 = vsub.f32 %v803, %v804
    %v806 = vand.u32 %v805, 4294901760
    %807 = vmatpush1.msra.mxu0 %v806
    %808 = vmatprep.subr.mxu0 0.0
    %v809 = vand.u32 %v157, 4294901760
    %v810 = vsub.f32 %v157, %v809
    %v811 = vand.u32 %v810, 4294901760
    %v812 = vsub.f32 %v810, %v811
    %v813 = vand.u32 %v812, 4294901760
    %814 = vmatpush1.msra.mxu0 %v813
    %815 = vmatprep.subr.mxu0 0.0
    %v816 = vand.u32 %v160, 4294901760
    %v817 = vsub.f32 %v160, %v816
    %v818 = vand.u32 %v817, 4294901760
    %v819 = vsub.f32 %v817, %v818
    %v820 = vand.u32 %v819, 4294901760
    %821 = vmatpush1.msra.mxu0 %v820
    %822 = vmatprep.subr.mxu0 0.0
    %823 = vmatpush1.msra.mxu0 0.0
    %824 = vmatprep.subr.mxu0 0.0
    %825 = vmatpush1.msra.mxu0 0.0
    %826 = vmatprep.subr.mxu0 0.0
    %827 = vmatpush1.msra.mxu0 0.0
    %828 = vmatprep.subr.mxu0 0.0
    %829 = vmatpush1.msra.mxu0 0.0
    %830 = vmatprep.subr.mxu0 0.0
    %831 = vmatpush1.msra.mxu0 0.0
    %832 = vmatprep.subr.mxu0 0.0
    %833 = vmatpush1.msra.mxu0 0.0
    %834 = vmatprep.subr.mxu0 0.0
    %835 = vmatpush1.msra.mxu0 0.0
    %836 = vmatprep.subr.mxu0 0.0
    %837 = vmatpush1.msra.mxu0 0.0
    %838 = vmatprep.subr.mxu0 0.0
    %839 = vmatpush1.msra.mxu0 0.0
    %840 = vmatprep.subr.mxu0 0.0
    %841 = vmatpush1.msra.mxu0 0.0
    %842 = vmatprep.subr.mxu0 0.0
    %843 = vmatpush1.msra.mxu0 0.0
    %844 = vmatprep.subr.mxu0 0.0
    %845 = vmatpush1.msra.mxu0 0.0
    %846 = vmatprep.subr.mxu0 0.0
    %847 = vmatpush1.msra.mxu0 0.0
    %848 = vmatprep.subr.mxu0 0.0
    %849 = vmatpush1.msra.mxu0 0.0
    %850 = vmatprep.subr.mxu0 0.0
    %851 = vmatpush1.msra.mxu0 0.0
    %852 = vmatprep.subr.mxu0 0.0
    %853 = vmatpush1.msra.mxu0 0.0
    %854 = vmatprep.subr.mxu0 0.0
    %855 = vmatpush1.msra.mxu0 0.0
    %856 = vmatprep.subr.mxu0 0.0
    %857 = vmatpush1.msra.mxu0 0.0
    %858 = vmatprep.subr.mxu0 0.0
    %859 = vmatpush1.msra.mxu0 0.0
    %860 = vmatprep.subr.mxu0 0.0
    %861 = vmatpush1.msra.mxu0 0.0
    %862 = vmatprep.subr.mxu0 0.0
    %863 = vmatpush1.msra.mxu0 0.0
    %864 = vmatprep.subr.mxu0 0.0
    %865 = vmatpush1.msra.mxu0 0.0
    %866 = vmatprep.subr.mxu0 0.0
    %867 = vmatpush1.msra.mxu0 0.0
    %868 = vmatprep.subr.mxu0 0.0
    %869 = vmatpush1.msra.mxu0 0.0
    %870 = vmatprep.subr.mxu0 0.0
    %871 = vmatpush1.msra.mxu0 0.0
    %872 = vmatprep.subr.mxu0 0.0
    %873 = vmatpush1.msra.mxu0 0.0
    %874 = vmatprep.subr.mxu0 0.0
    %875 = vmatpush1.msra.mxu0 0.0
    %876 = vmatprep.subr.mxu0 0.0
    %877 = vmatpush1.msra.mxu0 0.0
    %878 = vmatprep.mubr.f32.mxu0 0.0
    %v879 = vand.u32 %v170, 4294901760
    %880 = vmatmul.mubr.f32.gmra.mrb[0].mxu0 %v879
    %v881 = vpop.f32.mrb[0].mxu0
    %v882 = vadd.f32 %v791, %v881
    %v883 = vpop.f32.mrb[0].mxu0
    %884 = vdwg.mxu0
    %885 = vmatprep.subr.mxu0 0.0
    %v886 = vand.u32 %v151, 4294901760
    %v887 = vsub.f32 %v151, %v886
    %888 = vmatpush1.msra.mxu0 %v887
    %889 = vmatprep.subr.mxu0 0.0
    %v890 = vand.u32 %v154, 4294901760
    %v891 = vsub.f32 %v154, %v890
    %892 = vmatpush1.msra.mxu0 %v891
    %893 = vmatprep.subr.mxu0 0.0
    %v894 = vand.u32 %v157, 4294901760
    %v895 = vsub.f32 %v157, %v894
    %896 = vmatpush1.msra.mxu0 %v895
    %897 = vmatprep.subr.mxu0 0.0
    %v898 = vand.u32 %v160, 4294901760
    %v899 = vsub.f32 %v160, %v898
    %900 = vmatpush1.msra.mxu0 %v899
    %901 = vmatprep.subr.mxu0 0.0
    %902 = vmatpush1.msra.mxu0 0.0
    %903 = vmatprep.subr.mxu0 0.0
    %904 = vmatpush1.msra.mxu0 0.0
    %905 = vmatprep.subr.mxu0 0.0
    %906 = vmatpush1.msra.mxu0 0.0
    %907 = vmatprep.subr.mxu0 0.0
    %908 = vmatpush1.msra.mxu0 0.0
    %909 = vmatprep.subr.mxu0 0.0
    %910 = vmatpush1.msra.mxu0 0.0
    %911 = vmatprep.subr.mxu0 0.0
    %912 = vmatpush1.msra.mxu0 0.0
    %913 = vmatprep.subr.mxu0 0.0
    %914 = vmatpush1.msra.mxu0 0.0
    %915 = vmatprep.subr.mxu0 0.0
    %916 = vmatpush1.msra.mxu0 0.0
    %917 = vmatprep.subr.mxu0 0.0
    %918 = vmatpush1.msra.mxu0 0.0
    %919 = vmatprep.subr.mxu0 0.0
    %920 = vmatpush1.msra.mxu0 0.0
    %921 = vmatprep.subr.mxu0 0.0
    %922 = vmatpush1.msra.mxu0 0.0
    %923 = vmatprep.subr.mxu0 0.0
    %924 = vmatpush1.msra.mxu0 0.0
    %925 = vmatprep.subr.mxu0 0.0
    %926 = vmatpush1.msra.mxu0 0.0
    %927 = vmatprep.subr.mxu0 0.0
    %928 = vmatpush1.msra.mxu0 0.0
    %929 = vmatprep.subr.mxu0 0.0
    %930 = vmatpush1.msra.mxu0 0.0
    %931 = vmatprep.subr.mxu0 0.0
    %932 = vmatpush1.msra.mxu0 0.0
    %933 = vmatprep.subr.mxu0 0.0
    %934 = vmatpush1.msra.mxu0 0.0
    %935 = vmatprep.subr.mxu0 0.0
    %936 = vmatpush1.msra.mxu0 0.0
    %937 = vmatprep.subr.mxu0 0.0
    %938 = vmatpush1.msra.mxu0 0.0
    %939 = vmatprep.subr.mxu0 0.0
    %940 = vmatpush1.msra.mxu0 0.0
    %941 = vmatprep.subr.mxu0 0.0
    %942 = vmatpush1.msra.mxu0 0.0
    %943 = vmatprep.subr.mxu0 0.0
    %944 = vmatpush1.msra.mxu0 0.0
    %945 = vmatprep.subr.mxu0 0.0
    %946 = vmatpush1.msra.mxu0 0.0
    %947 = vmatprep.subr.mxu0 0.0
    %948 = vmatpush1.msra.mxu0 0.0
    %949 = vmatprep.subr.mxu0 0.0
    %950 = vmatpush1.msra.mxu0 0.0
    %951 = vmatprep.subr.mxu0 0.0
    %952 = vmatpush1.msra.mxu0 0.0
    %953 = vmatprep.subr.mxu0 0.0
    %954 = vmatpush1.msra.mxu0 0.0
    %955 = vmatprep.subr.mxu0 0.0
    %956 = vmatpush1.msra.mxu0 0.0
    %957 = vmatprep.mubr.f32.mxu0 0.0
    %v958 = vand.u32 %v170, 4294901760
    %v959 = vsub.f32 %v170, %v958
    %960 = vmatmul.mubr.f32.gmra.mrb[0].mxu0 %v959
    %v961 = vpop.f32.mrb[0].mxu0
    %v962 = vadd.f32 %v882, %v961
    %v963 = vpop.f32.mrb[0].mxu0
    %964 = vdwg.mxu0
    %965 = vmatprep.subr.mxu0 0.0
    %v966 = vand.u32 %v151, 4294901760
    %967 = vmatpush1.msra.mxu0 %v966
    %968 = vmatprep.subr.mxu0 0.0
    %v969 = vand.u32 %v154, 4294901760
    %970 = vmatpush1.msra.mxu0 %v969
    %971 = vmatprep.subr.mxu0 0.0
    %v972 = vand.u32 %v157, 4294901760
    %973 = vmatpush1.msra.mxu0 %v972
    %974 = vmatprep.subr.mxu0 0.0
    %v975 = vand.u32 %v160, 4294901760
    %976 = vmatpush1.msra.mxu0 %v975
    %977 = vmatprep.subr.mxu0 0.0
    %978 = vmatpush1.msra.mxu0 0.0
    %979 = vmatprep.subr.mxu0 0.0
    %980 = vmatpush1.msra.mxu0 0.0
    %981 = vmatprep.subr.mxu0 0.0
    %982 = vmatpush1.msra.mxu0 0.0
    %983 = vmatprep.subr.mxu0 0.0
    %984 = vmatpush1.msra.mxu0 0.0
    %985 = vmatprep.subr.mxu0 0.0
    %986 = vmatpush1.msra.mxu0 0.0
    %987 = vmatprep.subr.mxu0 0.0
    %988 = vmatpush1.msra.mxu0 0.0
    %989 = vmatprep.subr.mxu0 0.0
    %990 = vmatpush1.msra.mxu0 0.0
    %991 = vmatprep.subr.mxu0 0.0
    %992 = vmatpush1.msra.mxu0 0.0
    %993 = vmatprep.subr.mxu0 0.0
    %994 = vmatpush1.msra.mxu0 0.0
    %995 = vmatprep.subr.mxu0 0.0
    %996 = vmatpush1.msra.mxu0 0.0
    %997 = vmatprep.subr.mxu0 0.0
    %998 = vmatpush1.msra.mxu0 0.0
    %999 = vmatprep.subr.mxu0 0.0
    %1000 = vmatpush1.msra.mxu0 0.0
    %1001 = vmatprep.subr.mxu0 0.0
    %1002 = vmatpush1.msra.mxu0 0.0
    %1003 = vmatprep.subr.mxu0 0.0
    %1004 = vmatpush1.msra.mxu0 0.0
    %1005 = vmatprep.subr.mxu0 0.0
    %1006 = vmatpush1.msra.mxu0 0.0
    %1007 = vmatprep.subr.mxu0 0.0
    %1008 = vmatpush1.msra.mxu0 0.0
    %1009 = vmatprep.subr.mxu0 0.0
    %1010 = vmatpush1.msra.mxu0 0.0
    %1011 = vmatprep.subr.mxu0 0.0
    %1012 = vmatpush1.msra.mxu0 0.0
    %1013 = vmatprep.subr.mxu0 0.0
    %1014 = vmatpush1.msra.mxu0 0.0
    %1015 = vmatprep.subr.mxu0 0.0
    %1016 = vmatpush1.msra.mxu0 0.0
    %1017 = vmatprep.subr.mxu0 0.0
    %1018 = vmatpush1.msra.mxu0 0.0
    %1019 = vmatprep.subr.mxu0 0.0
    %1020 = vmatpush1.msra.mxu0 0.0
    %1021 = vmatprep.subr.mxu0 0.0
    %1022 = vmatpush1.msra.mxu0 0.0
    %1023 = vmatprep.subr.mxu0 0.0
    %1024 = vmatpush1.msra.mxu0 0.0
    %1025 = vmatprep.subr.mxu0 0.0
    %1026 = vmatpush1.msra.mxu0 0.0
    %1027 = vmatprep.subr.mxu0 0.0
    %1028 = vmatpush1.msra.mxu0 0.0
    %1029 = vmatprep.subr.mxu0 0.0
    %1030 = vmatpush1.msra.mxu0 0.0
    %1031 = vmatprep.subr.mxu0 0.0
    %1032 = vmatpush1.msra.mxu0 0.0
    %1033 = vmatprep.mubr.f32.mxu0 0.0
    %v1034 = vand.u32 %v170, 4294901760
    %v1035 = vsub.f32 %v170, %v1034
    %v1036 = vand.u32 %v1035, 4294901760
    %1037 = vmatmul.mubr.f32.gmra.mrb[0].mxu0 %v1036
    %v1038 = vpop.f32.mrb[0].mxu0
    %v1039 = vadd.f32 %v962, %v1038
    %v1040 = vpop.f32.mrb[0].mxu0
    %1041 = vdwg.mxu0
    %1042 = vmatprep.subr.mxu0 0.0
    %v1043 = vand.u32 %v151, 4294901760
    %v1044 = vsub.f32 %v151, %v1043
    %v1045 = vand.u32 %v1044, 4294901760
    %1046 = vmatpush1.msra.mxu0 %v1045
    %1047 = vmatprep.subr.mxu0 0.0
    %v1048 = vand.u32 %v154, 4294901760
    %v1049 = vsub.f32 %v154, %v1048
    %v1050 = vand.u32 %v1049, 4294901760
    %1051 = vmatpush1.msra.mxu0 %v1050
    %1052 = vmatprep.subr.mxu0 0.0
    %v1053 = vand.u32 %v157, 4294901760
    %v1054 = vsub.f32 %v157, %v1053
    %v1055 = vand.u32 %v1054, 4294901760
    %1056 = vmatpush1.msra.mxu0 %v1055
    %1057 = vmatprep.subr.mxu0 0.0
    %v1058 = vand.u32 %v160, 4294901760
    %v1059 = vsub.f32 %v160, %v1058
    %v1060 = vand.u32 %v1059, 4294901760
    %1061 = vmatpush1.msra.mxu0 %v1060
    %1062 = vmatprep.subr.mxu0 0.0
    %1063 = vmatpush1.msra.mxu0 0.0
    %1064 = vmatprep.subr.mxu0 0.0
    %1065 = vmatpush1.msra.mxu0 0.0
    %1066 = vmatprep.subr.mxu0 0.0
    %1067 = vmatpush1.msra.mxu0 0.0
    %1068 = vmatprep.subr.mxu0 0.0
    %1069 = vmatpush1.msra.mxu0 0.0
    %1070 = vmatprep.subr.mxu0 0.0
    %1071 = vmatpush1.msra.mxu0 0.0
    %1072 = vmatprep.subr.mxu0 0.0
    %1073 = vmatpush1.msra.mxu0 0.0
    %1074 = vmatprep.subr.mxu0 0.0
    %1075 = vmatpush1.msra.mxu0 0.0
    %1076 = vmatprep.subr.mxu0 0.0
    %1077 = vmatpush1.msra.mxu0 0.0
    %1078 = vmatprep.subr.mxu0 0.0
    %1079 = vmatpush1.msra.mxu0 0.0
    %1080 = vmatprep.subr.mxu0 0.0
    %1081 = vmatpush1.msra.mxu0 0.0
    %1082 = vmatprep.subr.mxu0 0.0
    %1083 = vmatpush1.msra.mxu0 0.0
    %1084 = vmatprep.subr.mxu0 0.0
    %1085 = vmatpush1.msra.mxu0 0.0
    %1086 = vmatprep.subr.mxu0 0.0
    %1087 = vmatpush1.msra.mxu0 0.0
    %1088 = vmatprep.subr.mxu0 0.0
    %1089 = vmatpush1.msra.mxu0 0.0
    %1090 = vmatprep.subr.mxu0 0.0
    %1091 = vmatpush1.msra.mxu0 0.0
    %1092 = vmatprep.subr.mxu0 0.0
    %1093 = vmatpush1.msra.mxu0 0.0
    %1094 = vmatprep.subr.mxu0 0.0
    %1095 = vmatpush1.msra.mxu0 0.0
    %1096 = vmatprep.subr.mxu0 0.0
    %1097 = vmatpush1.msra.mxu0 0.0
    %1098 = vmatprep.subr.mxu0 0.0
    %1099 = vmatpush1.msra.mxu0 0.0
    %1100 = vmatprep.subr.mxu0 0.0
    %1101 = vmatpush1.msra.mxu0 0.0
    %1102 = vmatprep.subr.mxu0 0.0
    %1103 = vmatpush1.msra.mxu0 0.0
    %1104 = vmatprep.subr.mxu0 0.0
    %1105 = vmatpush1.msra.mxu0 0.0
    %1106 = vmatprep.subr.mxu0 0.0
    %1107 = vmatpush1.msra.mxu0 0.0
    %1108 = vmatprep.subr.mxu0 0.0
    %1109 = vmatpush1.msra.mxu0 0.0
    %1110 = vmatprep.subr.mxu0 0.0
    %1111 = vmatpush1.msra.mxu0 0.0
    %1112 = vmatprep.subr.mxu0 0.0
    %1113 = vmatpush1.msra.mxu0 0.0
    %1114 = vmatprep.subr.mxu0 0.0
    %1115 = vmatpush1.msra.mxu0 0.0
    %1116 = vmatprep.subr.mxu0 0.0
    %1117 = vmatpush1.msra.mxu0 0.0
    %1118 = vmatprep.mubr.f32.mxu0 0.0
    %v1119 = vand.u32 %v170, 4294901760
    %1120 = vmatmul.mubr.f32.gmra.mrb[0].mxu0 %v1119
    %v1121 = vpop.f32.mrb[0].mxu0
    %v1122 = vadd.f32 %v1039, %v1121
    %v1123 = vpop.f32.mrb[0].mxu0
    %1124 = vdwg.mxu0
    %1125 = vmatprep.subr.mxu0 0.0
    %v1126 = vand.u32 %v151, 4294901760
    %1127 = vmatpush1.msra.mxu0 %v1126
    %1128 = vmatprep.subr.mxu0 0.0
    %v1129 = vand.u32 %v154, 4294901760
    %1130 = vmatpush1.msra.mxu0 %v1129
    %1131 = vmatprep.subr.mxu0 0.0
    %v1132 = vand.u32 %v157, 4294901760
    %1133 = vmatpush1.msra.mxu0 %v1132
    %1134 = vmatprep.subr.mxu0 0.0
    %v1135 = vand.u32 %v160, 4294901760
    %1136 = vmatpush1.msra.mxu0 %v1135
    %1137 = vmatprep.subr.mxu0 0.0
    %1138 = vmatpush1.msra.mxu0 0.0
    %1139 = vmatprep.subr.mxu0 0.0
    %1140 = vmatpush1.msra.mxu0 0.0
    %1141 = vmatprep.subr.mxu0 0.0
    %1142 = vmatpush1.msra.mxu0 0.0
    %1143 = vmatprep.subr.mxu0 0.0
    %1144 = vmatpush1.msra.mxu0 0.0
    %1145 = vmatprep.subr.mxu0 0.0
    %1146 = vmatpush1.msra.mxu0 0.0
    %1147 = vmatprep.subr.mxu0 0.0
    %1148 = vmatpush1.msra.mxu0 0.0
    %1149 = vmatprep.subr.mxu0 0.0
    %1150 = vmatpush1.msra.mxu0 0.0
    %1151 = vmatprep.subr.mxu0 0.0
    %1152 = vmatpush1.msra.mxu0 0.0
    %1153 = vmatprep.subr.mxu0 0.0
    %1154 = vmatpush1.msra.mxu0 0.0
    %1155 = vmatprep.subr.mxu0 0.0
    %1156 = vmatpush1.msra.mxu0 0.0
    %1157 = vmatprep.subr.mxu0 0.0
    %1158 = vmatpush1.msra.mxu0 0.0
    %1159 = vmatprep.subr.mxu0 0.0
    %1160 = vmatpush1.msra.mxu0 0.0
    %1161 = vmatprep.subr.mxu0 0.0
    %1162 = vmatpush1.msra.mxu0 0.0
    %1163 = vmatprep.subr.mxu0 0.0
    %1164 = vmatpush1.msra.mxu0 0.0
    %1165 = vmatprep.subr.mxu0 0.0
    %1166 = vmatpush1.msra.mxu0 0.0
    %1167 = vmatprep.subr.mxu0 0.0
    %1168 = vmatpush1.msra.mxu0 0.0
    %1169 = vmatprep.subr.mxu0 0.0
    %1170 = vmatpush1.msra.mxu0 0.0
    %1171 = vmatprep.subr.mxu0 0.0
    %1172 = vmatpush1.msra.mxu0 0.0
    %1173 = vmatprep.subr.mxu0 0.0
    %1174 = vmatpush1.msra.mxu0 0.0
    %1175 = vmatprep.subr.mxu0 0.0
    %1176 = vmatpush1.msra.mxu0 0.0
    %1177 = vmatprep.subr.mxu0 0.0
    %1178 = vmatpush1.msra.mxu0 0.0
    %1179 = vmatprep.subr.mxu0 0.0
    %1180 = vmatpush1.msra.mxu0 0.0
    %1181 = vmatprep.subr.mxu0 0.0
    %1182 = vmatpush1.msra.mxu0 0.0
    %1183 = vmatprep.subr.mxu0 0.0
    %1184 = vmatpush1.msra.mxu0 0.0
    %1185 = vmatprep.subr.mxu0 0.0
    %1186 = vmatpush1.msra.mxu0 0.0
    %1187 = vmatprep.subr.mxu0 0.0
    %1188 = vmatpush1.msra.mxu0 0.0
    %1189 = vmatprep.subr.mxu0 0.0
    %1190 = vmatpush1.msra.mxu0 0.0
    %1191 = vmatprep.subr.mxu0 0.0
    %1192 = vmatpush1.msra.mxu0 0.0
    %1193 = vmatprep.mubr.f32.mxu0 0.0
    %v1194 = vand.u32 %v170, 4294901760
    %1195 = vmatmul.mubr.f32.gmra.mrb[0].mxu0 %v1194
    %v1196 = vpop.f32.mrb[0].mxu0
    %v1197 = vadd.f32 %v1122, %v1196
    %v1198 = vpop.f32.mrb[0].mxu0
    %1199 = vdwg.mxu0
    %v1200 = vsub.f32 %v711, %v165
    %v1201 = vsub.f32 %v713, %v166
    %v1202 = vsub.f32 %v1197, %v167
    %v1203 = vmul.f32 %v1200, %v1200
    %v1204 = vmul.f32 %v1201, %v1201
    %v1205 = vmul.f32 %v1202, %v1202
    %v1206 = vadd.f32 %v1203, %v1204
    %v1207 = vadd.f32 %v1206, %v1205
    %v1208 = vld [vmem:[#allocation11] sm:$0xff]
    %v1209 = vadd.f32 %v1208, %v1207
    %1210 = vst [vmem:[#allocation11] sm:$0xff] %v1209
    %v1211 = vld [vmem:[#allocation12] sm:$0xff]
    %v1212 = vld [vmem:[#allocation12 + $0x8] sm:$0xff]
    %v1213 = vld [vmem:[#allocation12 + $0x10] sm:$0xff]
    %v1214 = vld [vmem:[#allocation12 + $0x18] sm:$0xff]
    %v1215 = vand.u32 %v150, 4294901760
    %1216 = vmatprep.subr.mxu0 %v1215
    %v1217 = vand.u32 %v149, 4294901760
    %1218 = vmatpush1.xpose.msra.mxu0 %v1217
    %v1219 = vand.u32 %v153, 4294901760
    %1220 = vmatprep.subr.mxu0 %v1219
    %v1221 = vand.u32 %v152, 4294901760
    %1222 = vmatpush1.xpose.msra.mxu0 %v1221
    %v1223 = vand.u32 %v156, 4294901760
    %1224 = vmatprep.subr.mxu0 %v1223
    %v1225 = vand.u32 %v155, 4294901760
    %1226 = vmatpush1.xpose.msra.mxu0 %v1225
    %v1227 = vand.u32 %v159, 4294901760
    %1228 = vmatprep.subr.mxu0 %v1227
    %v1229 = vand.u32 %v158, 4294901760
    %1230 = vmatpush1.xpose.msra.mxu0 %v1229
    %1231 = vmatprep.subr.mxu0 0.0
    %1232 = vmatpush1.xpose.msra.mxu0 0.0
    %1233 = vmatprep.subr.mxu0 0.0
    %1234 = vmatpush1.xpose.msra.mxu0 0.0
    %1235 = vmatprep.subr.mxu0 0.0
    %1236 = vmatpush1.xpose.msra.mxu0 0.0
    %1237 = vmatprep.subr.mxu0 0.0
    %1238 = vmatpush1.xpose.msra.mxu0 0.0
    %1239 = vmatprep.subr.mxu0 0.0
    %1240 = vmatpush1.xpose.msra.mxu0 0.0
    %1241 = vmatprep.subr.mxu0 0.0
    %1242 = vmatpush1.xpose.msra.mxu0 0.0
    %1243 = vmatprep.subr.mxu0 0.0
    %1244 = vmatpush1.xpose.msra.mxu0 0.0
    %1245 = vmatprep.subr.mxu0 0.0
    %1246 = vmatpush1.xpose.msra.mxu0 0.0
    %1247 = vmatprep.subr.mxu0 0.0
    %1248 = vmatpush1.xpose.msra.mxu0 0.0
    %1249 = vmatprep.subr.mxu0 0.0
    %1250 = vmatpush1.xpose.msra.mxu0 0.0
    %1251 = vmatprep.subr.mxu0 0.0
    %1252 = vmatpush1.xpose.msra.mxu0 0.0
    %1253 = vmatprep.subr.mxu0 0.0
    %1254 = vmatpush1.xpose.msra.mxu0 0.0
    %1255 = vmatprep.subr.mxu0 0.0
    %1256 = vmatpush1.xpose.msra.mxu0 0.0
    %1257 = vmatprep.subr.mxu0 0.0
    %1258 = vmatpush1.xpose.msra.mxu0 0.0
    %1259 = vmatprep.subr.mxu0 0.0
    %1260 = vmatpush1.xpose.msra.mxu0 0.0
    %1261 = vmatprep.subr.mxu0 0.0
    %1262 = vmatpush1.xpose.msra.mxu0 0.0
    %1263 = vmatprep.subr.mxu0 0.0
    %1264 = vmatpush1.xpose.msra.mxu0 0.0
    %1265 = vmatprep.subr.mxu0 0.0
    %1266 = vmatpush1.xpose.msra.mxu0 0.0
    %1267 = vmatprep.subr.mxu0 0.0
    %1268 = vmatpush1.xpose.msra.mxu0 0.0
    %1269 = vmatprep.subr.mxu0 0.0
    %1270 = vmatpush1.xpose.msra.mxu0 0.0
    %1271 = vmatprep.subr.mxu0 0.0
    %1272 = vmatpush1.xpose.msra.mxu0 0.0
    %1273 = vmatprep.subr.mxu0 0.0
    %1274 = vmatpush1.xpose.msra.mxu0 0.0
    %1275 = vmatprep.subr.mxu0 0.0
    %1276 = vmatpush1.xpose.msra.mxu0 0.0
    %1277 = vmatprep.subr.mxu0 0.0
    %1278 = vmatpush1.xpose.msra.mxu0 0.0
    %1279 = vmatprep.subr.mxu0 0.0
    %1280 = vmatpush1.xpose.msra.mxu0 0.0
    %1281 = vmatprep.subr.mxu0 0.0
    %1282 = vmatpush1.xpose.msra.mxu0 0.0
    %1283 = vmatprep.subr.mxu0 0.0
    %1284 = vmatpush1.xpose.msra.mxu0 0.0
    %1285 = vmatprep.subr.mxu0 0.0
    %1286 = vmatpush1.xpose.msra.mxu0 0.0
    %v1287 = vand.u32 %v150, 4294901760
    %v1288 = vsub.f32 %v150, %v1287
    %v1289 = vand.u32 %v1288, 4294901760
    %v1290 = vsub.f32 %v1288, %v1289
    %v1291 = vand.u32 %v1290, 4294901760
    %1292 = vmatprep.mubr.f32.mxu0 %v1291
    %v1293 = vand.u32 %v149, 4294901760
    %v1294 = vsub.f32 %v149, %v1293
    %v1295 = vand.u32 %v1294, 4294901760
    %v1296 = vsub.f32 %v1294, %v1295
    %v1297 = vand.u32 %v1296, 4294901760
    %1298 = vmatmul.mubr.f32.gmra.mrb[0].mxu0 %v1297
    %v1299 = vpop.f32.mrb[0].mxu0
    %v1300 = vadd.f32 0.0, %v1299
    %v1301 = vpop.f32.mrb[0].mxu0
    %v1302 = vand.u32 %v153, 4294901760
    %v1303 = vsub.f32 %v153, %v1302
    %v1304 = vand.u32 %v1303, 4294901760
    %v1305 = vsub.f32 %v1303, %v1304
    %v1306 = vand.u32 %v1305, 4294901760
    %1307 = vmatprep.mubr.f32.mxu0 %v1306
    %v1308 = vand.u32 %v152, 4294901760
    %v1309 = vsub.f32 %v152, %v1308
    %v1310 = vand.u32 %v1309, 4294901760
    %v1311 = vsub.f32 %v1309, %v1310
    %v1312 = vand.u32 %v1311, 4294901760
    %1313 = vmatmul.mubr.f32.gmra.mrb[0].mxu0 %v1312
    %v1314 = vpop.f32.mrb[0].mxu0
    %v1315 = vadd.f32 0.0, %v1314
    %v1316 = vpop.f32.mrb[0].mxu0
    %v1317 = vand.u32 %v156, 4294901760
    %v1318 = vsub.f32 %v156, %v1317
    %v1319 = vand.u32 %v1318, 4294901760
    %v1320 = vsub.f32 %v1318, %v1319
    %v1321 = vand.u32 %v1320, 4294901760
    %1322 = vmatprep.mubr.f32.mxu0 %v1321
    %v1323 = vand.u32 %v155, 4294901760
    %v1324 = vsub.f32 %v155, %v1323
    %v1325 = vand.u32 %v1324, 4294901760
    %v1326 = vsub.f32 %v1324, %v1325
    %v1327 = vand.u32 %v1326, 4294901760
    %1328 = vmatmul.mubr.f32.gmra.mrb[0].mxu0 %v1327
    %v1329 = vpop.f32.mrb[0].mxu0
    %v1330 = vadd.f32 0.0, %v1329
    %v1331 = vpop.f32.mrb[0].mxu0
    %v1332 = vand.u32 %v159, 4294901760
    %v1333 = vsub.f32 %v159, %v1332
    %v1334 = vand.u32 %v1333, 4294901760
    %v1335 = vsub.f32 %v1333, %v1334
    %v1336 = vand.u32 %v1335, 4294901760
    %1337 = vmatprep.mubr.f32.mxu0 %v1336
    %v1338 = vand.u32 %v158, 4294901760
    %v1339 = vsub.f32 %v158, %v1338
    %v1340 = vand.u32 %v1339, 4294901760
    %v1341 = vsub.f32 %v1339, %v1340
    %v1342 = vand.u32 %v1341, 4294901760
    %1343 = vmatmul.mubr.f32.gmra.mrb[0].mxu0 %v1342
    %v1344 = vpop.f32.mrb[0].mxu0
    %v1345 = vadd.f32 0.0, %v1344
    %v1346 = vpop.f32.mrb[0].mxu0
    %1347 = vdwg.mxu0
    %v1348 = vand.u32 %v150, 4294901760
    %v1349 = vsub.f32 %v150, %v1348
    %v1350 = vand.u32 %v1349, 4294901760
    %v1351 = vsub.f32 %v1349, %v1350
    %v1352 = vand.u32 %v1351, 4294901760
    %1353 = vmatprep.subr.mxu0 %v1352
    %v1354 = vand.u32 %v149, 4294901760
    %v1355 = vsub.f32 %v149, %v1354
    %v1356 = vand.u32 %v1355, 4294901760
    %v1357 = vsub.f32 %v1355, %v1356
    %v1358 = vand.u32 %v1357, 4294901760
    %1359 = vmatpush1.xpose.msra.mxu0 %v1358
    %v1360 = vand.u32 %v153, 4294901760
    %v1361 = vsub.f32 %v153, %v1360
    %v1362 = vand.u32 %v1361, 4294901760
    %v1363 = vsub.f32 %v1361, %v1362
    %v1364 = vand.u32 %v1363, 4294901760
    %1365 = vmatprep.subr.mxu0 %v1364
    %v1366 = vand.u32 %v152, 4294901760
    %v1367 = vsub.f32 %v152, %v1366
    %v1368 = vand.u32 %v1367, 4294901760
    %v1369 = vsub.f32 %v1367, %v1368
    %v1370 = vand.u32 %v1369, 4294901760
    %1371 = vmatpush1.xpose.msra.mxu0 %v1370
    %v1372 = vand.u32 %v156, 4294901760
    %v1373 = vsub.f32 %v156, %v1372
    %v1374 = vand.u32 %v1373, 4294901760
    %v1375 = vsub.f32 %v1373, %v1374
    %v1376 = vand.u32 %v1375, 4294901760
    %1377 = vmatprep.subr.mxu0 %v1376
    %v1378 = vand.u32 %v155, 4294901760
    %v1379 = vsub.f32 %v155, %v1378
    %v1380 = vand.u32 %v1379, 4294901760
    %v1381 = vsub.f32 %v1379, %v1380
    %v1382 = vand.u32 %v1381, 4294901760
    %1383 = vmatpush1.xpose.msra.mxu0 %v1382
    %v1384 = vand.u32 %v159, 4294901760
    %v1385 = vsub.f32 %v159, %v1384
    %v1386 = vand.u32 %v1385, 4294901760
    %v1387 = vsub.f32 %v1385, %v1386
    %v1388 = vand.u32 %v1387, 4294901760
    %1389 = vmatprep.subr.mxu0 %v1388
    %v1390 = vand.u32 %v158, 4294901760
    %v1391 = vsub.f32 %v158, %v1390
    %v1392 = vand.u32 %v1391, 4294901760
    %v1393 = vsub.f32 %v1391, %v1392
    %v1394 = vand.u32 %v1393, 4294901760
    %1395 = vmatpush1.xpose.msra.mxu0 %v1394
    %1396 = vmatprep.subr.mxu0 0.0
    %1397 = vmatpush1.xpose.msra.mxu0 0.0
    %1398 = vmatprep.subr.mxu0 0.0
    %1399 = vmatpush1.xpose.msra.mxu0 0.0
    %1400 = vmatprep.subr.mxu0 0.0
    %1401 = vmatpush1.xpose.msra.mxu0 0.0
    %1402 = vmatprep.subr.mxu0 0.0
    %1403 = vmatpush1.xpose.msra.mxu0 0.0
    %1404 = vmatprep.subr.mxu0 0.0
    %1405 = vmatpush1.xpose.msra.mxu0 0.0
    %1406 = vmatprep.subr.mxu0 0.0
    %1407 = vmatpush1.xpose.msra.mxu0 0.0
    %1408 = vmatprep.subr.mxu0 0.0
    %1409 = vmatpush1.xpose.msra.mxu0 0.0
    %1410 = vmatprep.subr.mxu0 0.0
    %1411 = vmatpush1.xpose.msra.mxu0 0.0
    %1412 = vmatprep.subr.mxu0 0.0
    %1413 = vmatpush1.xpose.msra.mxu0 0.0
    %1414 = vmatprep.subr.mxu0 0.0
    %1415 = vmatpush1.xpose.msra.mxu0 0.0
    %1416 = vmatprep.subr.mxu0 0.0
    %1417 = vmatpush1.xpose.msra.mxu0 0.0
    %1418 = vmatprep.subr.mxu0 0.0
    %1419 = vmatpush1.xpose.msra.mxu0 0.0
    %1420 = vmatprep.subr.mxu0 0.0
    %1421 = vmatpush1.xpose.msra.mxu0 0.0
    %1422 = vmatprep.subr.mxu0 0.0
    %1423 = vmatpush1.xpose.msra.mxu0 0.0
    %1424 = vmatprep.subr.mxu0 0.0
    %1425 = vmatpush1.xpose.msra.mxu0 0.0
    %1426 = vmatprep.subr.mxu0 0.0
    %1427 = vmatpush1.xpose.msra.mxu0 0.0
    %1428 = vmatprep.subr.mxu0 0.0
    %1429 = vmatpush1.xpose.msra.mxu0 0.0
    %1430 = vmatprep.subr.mxu0 0.0
    %1431 = vmatpush1.xpose.msra.mxu0 0.0
    %1432 = vmatprep.subr.mxu0 0.0
    %1433 = vmatpush1.xpose.msra.mxu0 0.0
    %1434 = vmatprep.subr.mxu0 0.0
    %1435 = vmatpush1.xpose.msra.mxu0 0.0
    %1436 = vmatprep.subr.mxu0 0.0
    %1437 = vmatpush1.xpose.msra.mxu0 0.0
    %1438 = vmatprep.subr.mxu0 0.0
    %1439 = vmatpush1.xpose.msra.mxu0 0.0
    %1440 = vmatprep.subr.mxu0 0.0
    %1441 = vmatpush1.xpose.msra.mxu0 0.0
    %1442 = vmatprep.subr.mxu0 0.0
    %1443 = vmatpush1.xpose.msra.mxu0 0.0
    %1444 = vmatprep.subr.mxu0 0.0
    %1445 = vmatpush1.xpose.msra.mxu0 0.0
    %1446 = vmatprep.subr.mxu0 0.0
    %1447 = vmatpush1.xpose.msra.mxu0 0.0
    %1448 = vmatprep.subr.mxu0 0.0
    %1449 = vmatpush1.xpose.msra.mxu0 0.0
    %1450 = vmatprep.subr.mxu0 0.0
    %1451 = vmatpush1.xpose.msra.mxu0 0.0
    %v1452 = vand.u32 %v150, 4294901760
    %1453 = vmatprep.mubr.f32.mxu0 %v1452
    %v1454 = vand.u32 %v149, 4294901760
    %1455 = vmatmul.mubr.f32.gmra.mrb[0].mxu0 %v1454
    %v1456 = vpop.f32.mrb[0].mxu0
    %v1457 = vadd.f32 %v1300, %v1456
    %v1458 = vpop.f32.mrb[0].mxu0
    %v1459 = vand.u32 %v153, 4294901760
    %1460 = vmatprep.mubr.f32.mxu0 %v1459
    %v1461 = vand.u32 %v152, 4294901760
    %1462 = vmatmul.mubr.f32.gmra.mrb[0].mxu0 %v1461
    %v1463 = vpop.f32.mrb[0].mxu0
    %v1464 = vadd.f32 %v1315, %v1463
    %v1465 = vpop.f32.mrb[0].mxu0
    %v1466 = vand.u32 %v156, 4294901760
    %1467 = vmatprep.mubr.f32.mxu0 %v1466
    %v1468 = vand.u32 %v155, 4294901760
    %1469 = vmatmul.mubr.f32.gmra.mrb[0].mxu0 %v1468
    %v1470 = vpop.f32.mrb[0].mxu0
    %v1471 = vadd.f32 %v1330, %v1470
    %v1472 = vpop.f32.mrb[0].mxu0
    %v1473 = vand.u32 %v159, 4294901760
    %1474 = vmatprep.mubr.f32.mxu0 %v1473
    %v1475 = vand.u32 %v158, 4294901760
    %1476 = vmatmul.mubr.f32.gmra.mrb[0].mxu0 %v1475
    %v1477 = vpop.f32.mrb[0].mxu0
    %v1478 = vadd.f32 %v1345, %v1477
    %v1479 = vpop.f32.mrb[0].mxu0
    %1480 = vdwg.mxu0
    %v1481 = vand.u32 %v150, 4294901760
    %v1482 = vsub.f32 %v150, %v1481
    %1483 = vmatprep.subr.mxu0 %v1482
    %v1484 = vand.u32 %v149, 4294901760
    %v1485 = vsub.f32 %v149, %v1484
    %1486 = vmatpush1.xpose.msra.mxu0 %v1485
    %v1487 = vand.u32 %v153, 4294901760
    %v1488 = vsub.f32 %v153, %v1487
    %1489 = vmatprep.subr.mxu0 %v1488
    %v1490 = vand.u32 %v152, 4294901760
    %v1491 = vsub.f32 %v152, %v1490
    %1492 = vmatpush1.xpose.msra.mxu0 %v1491
    %v1493 = vand.u32 %v156, 4294901760
    %v1494 = vsub.f32 %v156, %v1493
    %1495 = vmatprep.subr.mxu0 %v1494
    %v1496 = vand.u32 %v155, 4294901760
    %v1497 = vsub.f32 %v155, %v1496
    %1498 = vmatpush1.xpose.msra.mxu0 %v1497
    %v1499 = vand.u32 %v159, 4294901760
    %v1500 = vsub.f32 %v159, %v1499
    %1501 = vmatprep.subr.mxu0 %v1500
    %v1502 = vand.u32 %v158, 4294901760
    %v1503 = vsub.f32 %v158, %v1502
    %1504 = vmatpush1.xpose.msra.mxu0 %v1503
    %1505 = vmatprep.subr.mxu0 0.0
    %1506 = vmatpush1.xpose.msra.mxu0 0.0
    %1507 = vmatprep.subr.mxu0 0.0
    %1508 = vmatpush1.xpose.msra.mxu0 0.0
    %1509 = vmatprep.subr.mxu0 0.0
    %1510 = vmatpush1.xpose.msra.mxu0 0.0
    %1511 = vmatprep.subr.mxu0 0.0
    %1512 = vmatpush1.xpose.msra.mxu0 0.0
    %1513 = vmatprep.subr.mxu0 0.0
    %1514 = vmatpush1.xpose.msra.mxu0 0.0
    %1515 = vmatprep.subr.mxu0 0.0
    %1516 = vmatpush1.xpose.msra.mxu0 0.0
    %1517 = vmatprep.subr.mxu0 0.0
    %1518 = vmatpush1.xpose.msra.mxu0 0.0
    %1519 = vmatprep.subr.mxu0 0.0
    %1520 = vmatpush1.xpose.msra.mxu0 0.0
    %1521 = vmatprep.subr.mxu0 0.0
    %1522 = vmatpush1.xpose.msra.mxu0 0.0
    %1523 = vmatprep.subr.mxu0 0.0
    %1524 = vmatpush1.xpose.msra.mxu0 0.0
    %1525 = vmatprep.subr.mxu0 0.0
    %1526 = vmatpush1.xpose.msra.mxu0 0.0
    %1527 = vmatprep.subr.mxu0 0.0
    %1528 = vmatpush1.xpose.msra.mxu0 0.0
    %1529 = vmatprep.subr.mxu0 0.0
    %1530 = vmatpush1.xpose.msra.mxu0 0.0
    %1531 = vmatprep.subr.mxu0 0.0
    %1532 = vmatpush1.xpose.msra.mxu0 0.0
    %1533 = vmatprep.subr.mxu0 0.0
    %1534 = vmatpush1.xpose.msra.mxu0 0.0
    %1535 = vmatprep.subr.mxu0 0.0
    %1536 = vmatpush1.xpose.msra.mxu0 0.0
    %1537 = vmatprep.subr.mxu0 0.0
    %1538 = vmatpush1.xpose.msra.mxu0 0.0
    %1539 = vmatprep.subr.mxu0 0.0
    %1540 = vmatpush1.xpose.msra.mxu0 0.0
    %1541 = vmatprep.subr.mxu0 0.0
    %1542 = vmatpush1.xpose.msra.mxu0 0.0
    %1543 = vmatprep.subr.mxu0 0.0
    %1544 = vmatpush1.xpose.msra.mxu0 0.0
    %1545 = vmatprep.subr.mxu0 0.0
    %1546 = vmatpush1.xpose.msra.mxu0 0.0
    %1547 = vmatprep.subr.mxu0 0.0
    %1548 = vmatpush1.xpose.msra.mxu0 0.0
    %1549 = vmatprep.subr.mxu0 0.0
    %1550 = vmatpush1.xpose.msra.mxu0 0.0
    %1551 = vmatprep.subr.mxu0 0.0
    %1552 = vmatpush1.xpose.msra.mxu0 0.0
    %1553 = vmatprep.subr.mxu0 0.0
    %1554 = vmatpush1.xpose.msra.mxu0 0.0
    %1555 = vmatprep.subr.mxu0 0.0
    %1556 = vmatpush1.xpose.msra.mxu0 0.0
    %1557 = vmatprep.subr.mxu0 0.0
    %1558 = vmatpush1.xpose.msra.mxu0 0.0
    %1559 = vmatprep.subr.mxu0 0.0
    %1560 = vmatpush1.xpose.msra.mxu0 0.0
    %v1561 = vand.u32 %v150, 4294901760
    %v1562 = vsub.f32 %v150, %v1561
    %1563 = vmatprep.mubr.f32.mxu0 %v1562
    %v1564 = vand.u32 %v149, 4294901760
    %v1565 = vsub.f32 %v149, %v1564
    %1566 = vmatmul.mubr.f32.gmra.mrb[0].mxu0 %v1565
    %v1567 = vpop.f32.mrb[0].mxu0
    %v1568 = vadd.f32 %v1457, %v1567
    %v1569 = vpop.f32.mrb[0].mxu0
    %v1570 = vand.u32 %v153, 4294901760
    %v1571 = vsub.f32 %v153, %v1570
    %1572 = vmatprep.mubr.f32.mxu0 %v1571
    %v1573 = vand.u32 %v152, 4294901760
    %v1574 = vsub.f32 %v152, %v1573
    %1575 = vmatmul.mubr.f32.gmra.mrb[0].mxu0 %v1574
    %v1576 = vpop.f32.mrb[0].mxu0
    %v1577 = vadd.f32 %v1464, %v1576
    %v1578 = vpop.f32.mrb[0].mxu0
    %v1579 = vand.u32 %v156, 4294901760
    %v1580 = vsub.f32 %v156, %v1579
    %1581 = vmatprep.mubr.f32.mxu0 %v1580
    %v1582 = vand.u32 %v155, 4294901760
    %v1583 = vsub.f32 %v155, %v1582
    %1584 = vmatmul.mubr.f32.gmra.mrb[0].mxu0 %v1583
    %v1585 = vpop.f32.mrb[0].mxu0
    %v1586 = vadd.f32 %v1471, %v1585
    %v1587 = vpop.f32.mrb[0].mxu0
    %v1588 = vand.u32 %v159, 4294901760
    %v1589 = vsub.f32 %v159, %v1588
    %1590 = vmatprep.mubr.f32.mxu0 %v1589
    %v1591 = vand.u32 %v158, 4294901760
    %v1592 = vsub.f32 %v158, %v1591
    %1593 = vmatmul.mubr.f32.gmra.mrb[0].mxu0 %v1592
    %v1594 = vpop.f32.mrb[0].mxu0
    %v1595 = vadd.f32 %v1478, %v1594
    %v1596 = vpop.f32.mrb[0].mxu0
    %1597 = vdwg.mxu0
    %v1598 = vand.u32 %v150, 4294901760
    %1599 = vmatprep.subr.mxu0 %v1598
    %v1600 = vand.u32 %v149, 4294901760
    %1601 = vmatpush1.xpose.msra.mxu0 %v1600
    %v1602 = vand.u32 %v153, 4294901760
    %1603 = vmatprep.subr.mxu0 %v1602
    %v1604 = vand.u32 %v152, 4294901760
    %1605 = vmatpush1.xpose.msra.mxu0 %v1604
    %v1606 = vand.u32 %v156, 4294901760
    %1607 = vmatprep.subr.mxu0 %v1606
    %v1608 = vand.u32 %v155, 4294901760
    %1609 = vmatpush1.xpose.msra.mxu0 %v1608
    %v1610 = vand.u32 %v159, 4294901760
    %1611 = vmatprep.subr.mxu0 %v1610
    %v1612 = vand.u32 %v158, 4294901760
    %1613 = vmatpush1.xpose.msra.mxu0 %v1612
    %1614 = vmatprep.subr.mxu0 0.0
    %1615 = vmatpush1.xpose.msra.mxu0 0.0
    %1616 = vmatprep.subr.mxu0 0.0
    %1617 = vmatpush1.xpose.msra.mxu0 0.0
    %1618 = vmatprep.subr.mxu0 0.0
    %1619 = vmatpush1.xpose.msra.mxu0 0.0
    %1620 = vmatprep.subr.mxu0 0.0
    %1621 = vmatpush1.xpose.msra.mxu0 0.0
    %1622 = vmatprep.subr.mxu0 0.0
    %1623 = vmatpush1.xpose.msra.mxu0 0.0
    %1624 = vmatprep.subr.mxu0 0.0
    %1625 = vmatpush1.xpose.msra.mxu0 0.0
    %1626 = vmatprep.subr.mxu0 0.0
    %1627 = vmatpush1.xpose.msra.mxu0 0.0
    %1628 = vmatprep.subr.mxu0 0.0
    %1629 = vmatpush1.xpose.msra.mxu0 0.0
    %1630 = vmatprep.subr.mxu0 0.0
    %1631 = vmatpush1.xpose.msra.mxu0 0.0
    %1632 = vmatprep.subr.mxu0 0.0
    %1633 = vmatpush1.xpose.msra.mxu0 0.0
    %1634 = vmatprep.subr.mxu0 0.0
    %1635 = vmatpush1.xpose.msra.mxu0 0.0
    %1636 = vmatprep.subr.mxu0 0.0
    %1637 = vmatpush1.xpose.msra.mxu0 0.0
    %1638 = vmatprep.subr.mxu0 0.0
    %1639 = vmatpush1.xpose.msra.mxu0 0.0
    %1640 = vmatprep.subr.mxu0 0.0
    %1641 = vmatpush1.xpose.msra.mxu0 0.0
    %1642 = vmatprep.subr.mxu0 0.0
    %1643 = vmatpush1.xpose.msra.mxu0 0.0
    %1644 = vmatprep.subr.mxu0 0.0
    %1645 = vmatpush1.xpose.msra.mxu0 0.0
    %1646 = vmatprep.subr.mxu0 0.0
    %1647 = vmatpush1.xpose.msra.mxu0 0.0
    %1648 = vmatprep.subr.mxu0 0.0
    %1649 = vmatpush1.xpose.msra.mxu0 0.0
    %1650 = vmatprep.subr.mxu0 0.0
    %1651 = vmatpush1.xpose.msra.mxu0 0.0
    %1652 = vmatprep.subr.mxu0 0.0
    %1653 = vmatpush1.xpose.msra.mxu0 0.0
    %1654 = vmatprep.subr.mxu0 0.0
    %1655 = vmatpush1.xpose.msra.mxu0 0.0
    %1656 = vmatprep.subr.mxu0 0.0
    %1657 = vmatpush1.xpose.msra.mxu0 0.0
    %1658 = vmatprep.subr.mxu0 0.0
    %1659 = vmatpush1.xpose.msra.mxu0 0.0
    %1660 = vmatprep.subr.mxu0 0.0
    %1661 = vmatpush1.xpose.msra.mxu0 0.0
    %1662 = vmatprep.subr.mxu0 0.0
    %1663 = vmatpush1.xpose.msra.mxu0 0.0
    %1664 = vmatprep.subr.mxu0 0.0
    %1665 = vmatpush1.xpose.msra.mxu0 0.0
    %1666 = vmatprep.subr.mxu0 0.0
    %1667 = vmatpush1.xpose.msra.mxu0 0.0
    %1668 = vmatprep.subr.mxu0 0.0
    %1669 = vmatpush1.xpose.msra.mxu0 0.0
    %v1670 = vand.u32 %v150, 4294901760
    %v1671 = vsub.f32 %v150, %v1670
    %v1672 = vand.u32 %v1671, 4294901760
    %1673 = vmatprep.mubr.f32.mxu0 %v1672
    %v1674 = vand.u32 %v149, 4294901760
    %v1675 = vsub.f32 %v149, %v1674
    %v1676 = vand.u32 %v1675, 4294901760
    %1677 = vmatmul.mubr.f32.gmra.mrb[0].mxu0 %v1676
    %v1678 = vpop.f32.mrb[0].mxu0
    %v1679 = vadd.f32 %v1568, %v1678
    %v1680 = vpop.f32.mrb[0].mxu0
    %v1681 = vand.u32 %v153, 4294901760
    %v1682 = vsub.f32 %v153, %v1681
    %v1683 = vand.u32 %v1682, 4294901760
    %1684 = vmatprep.mubr.f32.mxu0 %v1683
    %v1685 = vand.u32 %v152, 4294901760
    %v1686 = vsub.f32 %v152, %v1685
    %v1687 = vand.u32 %v1686, 4294901760
    %1688 = vmatmul.mubr.f32.gmra.mrb[0].mxu0 %v1687
    %v1689 = vpop.f32.mrb[0].mxu0
    %v1690 = vadd.f32 %v1577, %v1689
    %v1691 = vpop.f32.mrb[0].mxu0
    %v1692 = vand.u32 %v156, 4294901760
    %v1693 = vsub.f32 %v156, %v1692
    %v1694 = vand.u32 %v1693, 4294901760
    %1695 = vmatprep.mubr.f32.mxu0 %v1694
    %v1696 = vand.u32 %v155, 4294901760
    %v1697 = vsub.f32 %v155, %v1696
    %v1698 = vand.u32 %v1697, 4294901760
    %1699 = vmatmul.mubr.f32.gmra.mrb[0].mxu0 %v1698
    %v1700 = vpop.f32.mrb[0].mxu0
    %v1701 = vadd.f32 %v1586, %v1700
    %v1702 = vpop.f32.mrb[0].mxu0
    %v1703 = vand.u32 %v159, 4294901760
    %v1704 = vsub.f32 %v159, %v1703
    %v1705 = vand.u32 %v1704, 4294901760
    %1706 = vmatprep.mubr.f32.mxu0 %v1705
    %v1707 = vand.u32 %v158, 4294901760
    %v1708 = vsub.f32 %v158, %v1707
    %v1709 = vand.u32 %v1708, 4294901760
    %1710 = vmatmul.mubr.f32.gmra.mrb[0].mxu0 %v1709
    %v1711 = vpop.f32.mrb[0].mxu0
    %v1712 = vadd.f32 %v1595, %v1711
    %v1713 = vpop.f32.mrb[0].mxu0
    %1714 = vdwg.mxu0
    %v1715 = vand.u32 %v150, 4294901760
    %v1716 = vsub.f32 %v150, %v1715
    %v1717 = vand.u32 %v1716, 4294901760
    %1718 = vmatprep.subr.mxu0 %v1717
    %v1719 = vand.u32 %v149, 4294901760
    %v1720 = vsub.f32 %v149, %v1719
    %v1721 = vand.u32 %v1720, 4294901760
    %1722 = vmatpush1.xpose.msra.mxu0 %v1721
    %v1723 = vand.u32 %v153, 4294901760
    %v1724 = vsub.f32 %v153, %v1723
    %v1725 = vand.u32 %v1724, 4294901760
    %1726 = vmatprep.subr.mxu0 %v1725
    %v1727 = vand.u32 %v152, 4294901760
    %v1728 = vsub.f32 %v152, %v1727
    %v1729 = vand.u32 %v1728, 4294901760
    %1730 = vmatpush1.xpose.msra.mxu0 %v1729
    %v1731 = vand.u32 %v156, 4294901760
    %v1732 = vsub.f32 %v156, %v1731
    %v1733 = vand.u32 %v1732, 4294901760
    %1734 = vmatprep.subr.mxu0 %v1733
    %v1735 = vand.u32 %v155, 4294901760
    %v1736 = vsub.f32 %v155, %v1735
    %v1737 = vand.u32 %v1736, 4294901760
    %1738 = vmatpush1.xpose.msra.mxu0 %v1737
    %v1739 = vand.u32 %v159, 4294901760
    %v1740 = vsub.f32 %v159, %v1739
    %v1741 = vand.u32 %v1740, 4294901760
    %1742 = vmatprep.subr.mxu0 %v1741
    %v1743 = vand.u32 %v158, 4294901760
    %v1744 = vsub.f32 %v158, %v1743
    %v1745 = vand.u32 %v1744, 4294901760
    %1746 = vmatpush1.xpose.msra.mxu0 %v1745
    %1747 = vmatprep.subr.mxu0 0.0
    %1748 = vmatpush1.xpose.msra.mxu0 0.0
    %1749 = vmatprep.subr.mxu0 0.0
    %1750 = vmatpush1.xpose.msra.mxu0 0.0
    %1751 = vmatprep.subr.mxu0 0.0
    %1752 = vmatpush1.xpose.msra.mxu0 0.0
    %1753 = vmatprep.subr.mxu0 0.0
    %1754 = vmatpush1.xpose.msra.mxu0 0.0
    %1755 = vmatprep.subr.mxu0 0.0
    %1756 = vmatpush1.xpose.msra.mxu0 0.0
    %1757 = vmatprep.subr.mxu0 0.0
    %1758 = vmatpush1.xpose.msra.mxu0 0.0
    %1759 = vmatprep.subr.mxu0 0.0
    %1760 = vmatpush1.xpose.msra.mxu0 0.0
    %1761 = vmatprep.subr.mxu0 0.0
    %1762 = vmatpush1.xpose.msra.mxu0 0.0
    %1763 = vmatprep.subr.mxu0 0.0
    %1764 = vmatpush1.xpose.msra.mxu0 0.0
    %1765 = vmatprep.subr.mxu0 0.0
    %1766 = vmatpush1.xpose.msra.mxu0 0.0
    %1767 = vmatprep.subr.mxu0 0.0
    %1768 = vmatpush1.xpose.msra.mxu0 0.0
    %1769 = vmatprep.subr.mxu0 0.0
    %1770 = vmatpush1.xpose.msra.mxu0 0.0
    %1771 = vmatprep.subr.mxu0 0.0
    %1772 = vmatpush1.xpose.msra.mxu0 0.0
    %1773 = vmatprep.subr.mxu0 0.0
    %1774 = vmatpush1.xpose.msra.mxu0 0.0
    %1775 = vmatprep.subr.mxu0 0.0
    %1776 = vmatpush1.xpose.msra.mxu0 0.0
    %1777 = vmatprep.subr.mxu0 0.0
    %1778 = vmatpush1.xpose.msra.mxu0 0.0
    %1779 = vmatprep.subr.mxu0 0.0
    %1780 = vmatpush1.xpose.msra.mxu0 0.0
    %1781 = vmatprep.subr.mxu0 0.0
    %1782 = vmatpush1.xpose.msra.mxu0 0.0
    %1783 = vmatprep.subr.mxu0 0.0
    %1784 = vmatpush1.xpose.msra.mxu0 0.0
    %1785 = vmatprep.subr.mxu0 0.0
    %1786 = vmatpush1.xpose.msra.mxu0 0.0
    %1787 = vmatprep.subr.mxu0 0.0
    %1788 = vmatpush1.xpose.msra.mxu0 0.0
    %1789 = vmatprep.subr.mxu0 0.0
    %1790 = vmatpush1.xpose.msra.mxu0 0.0
    %1791 = vmatprep.subr.mxu0 0.0
    %1792 = vmatpush1.xpose.msra.mxu0 0.0
    %1793 = vmatprep.subr.mxu0 0.0
    %1794 = vmatpush1.xpose.msra.mxu0 0.0
    %1795 = vmatprep.subr.mxu0 0.0
    %1796 = vmatpush1.xpose.msra.mxu0 0.0
    %1797 = vmatprep.subr.mxu0 0.0
    %1798 = vmatpush1.xpose.msra.mxu0 0.0
    %1799 = vmatprep.subr.mxu0 0.0
    %1800 = vmatpush1.xpose.msra.mxu0 0.0
    %1801 = vmatprep.subr.mxu0 0.0
    %1802 = vmatpush1.xpose.msra.mxu0 0.0
    %v1803 = vand.u32 %v150, 4294901760
    %1804 = vmatprep.mubr.f32.mxu0 %v1803
    %v1805 = vand.u32 %v149, 4294901760
    %1806 = vmatmul.mubr.f32.gmra.mrb[0].mxu0 %v1805
    %v1807 = vpop.f32.mrb[0].mxu0
    %v1808 = vadd.f32 %v1679, %v1807
    %v1809 = vpop.f32.mrb[0].mxu0
    %v1810 = vand.u32 %v153, 4294901760
    %1811 = vmatprep.mubr.f32.mxu0 %v1810
    %v1812 = vand.u32 %v152, 4294901760
    %1813 = vmatmul.mubr.f32.gmra.mrb[0].mxu0 %v1812
    %v1814 = vpop.f32.mrb[0].mxu0
    %v1815 = vadd.f32 %v1690, %v1814
    %v1816 = vpop.f32.mrb[0].mxu0
    %v1817 = vand.u32 %v156, 4294901760
    %1818 = vmatprep.mubr.f32.mxu0 %v1817
    %v1819 = vand.u32 %v155, 4294901760
    %1820 = vmatmul.mubr.f32.gmra.mrb[0].mxu0 %v1819
    %v1821 = vpop.f32.mrb[0].mxu0
    %v1822 = vadd.f32 %v1701, %v1821
    %v1823 = vpop.f32.mrb[0].mxu0
    %v1824 = vand.u32 %v159, 4294901760
    %1825 = vmatprep.mubr.f32.mxu0 %v1824
    %v1826 = vand.u32 %v158, 4294901760
    %1827 = vmatmul.mubr.f32.gmra.mrb[0].mxu0 %v1826
    %v1828 = vpop.f32.mrb[0].mxu0
    %v1829 = vadd.f32 %v1712, %v1828
    %v1830 = vpop.f32.mrb[0].mxu0
    %1831 = vdwg.mxu0
    %v1832 = vand.u32 %v150, 4294901760
    %1833 = vmatprep.subr.mxu0 %v1832
    %v1834 = vand.u32 %v149, 4294901760
    %1835 = vmatpush1.xpose.msra.mxu0 %v1834
    %v1836 = vand.u32 %v153, 4294901760
    %1837 = vmatprep.subr.mxu0 %v1836
    %v1838 = vand.u32 %v152, 4294901760
    %1839 = vmatpush1.xpose.msra.mxu0 %v1838
    %v1840 = vand.u32 %v156, 4294901760
    %1841 = vmatprep.subr.mxu0 %v1840
    %v1842 = vand.u32 %v155, 4294901760
    %1843 = vmatpush1.xpose.msra.mxu0 %v1842
    %v1844 = vand.u32 %v159, 4294901760
    %1845 = vmatprep.subr.mxu0 %v1844
    %v1846 = vand.u32 %v158, 4294901760
    %1847 = vmatpush1.xpose.msra.mxu0 %v1846
    %1848 = vmatprep.subr.mxu0 0.0
    %1849 = vmatpush1.xpose.msra.mxu0 0.0
    %1850 = vmatprep.subr.mxu0 0.0
    %1851 = vmatpush1.xpose.msra.mxu0 0.0
    %1852 = vmatprep.subr.mxu0 0.0
    %1853 = vmatpush1.xpose.msra.mxu0 0.0
    %1854 = vmatprep.subr.mxu0 0.0
    %1855 = vmatpush1.xpose.msra.mxu0 0.0
    %1856 = vmatprep.subr.mxu0 0.0
    %1857 = vmatpush1.xpose.msra.mxu0 0.0
    %1858 = vmatprep.subr.mxu0 0.0
    %1859 = vmatpush1.xpose.msra.mxu0 0.0
    %1860 = vmatprep.subr.mxu0 0.0
    %1861 = vmatpush1.xpose.msra.mxu0 0.0
    %1862 = vmatprep.subr.mxu0 0.0
    %1863 = vmatpush1.xpose.msra.mxu0 0.0
    %1864 = vmatprep.subr.mxu0 0.0
    %1865 = vmatpush1.xpose.msra.mxu0 0.0
    %1866 = vmatprep.subr.mxu0 0.0
    %1867 = vmatpush1.xpose.msra.mxu0 0.0
    %1868 = vmatprep.subr.mxu0 0.0
    %1869 = vmatpush1.xpose.msra.mxu0 0.0
    %1870 = vmatprep.subr.mxu0 0.0
    %1871 = vmatpush1.xpose.msra.mxu0 0.0
    %1872 = vmatprep.subr.mxu0 0.0
    %1873 = vmatpush1.xpose.msra.mxu0 0.0
    %1874 = vmatprep.subr.mxu0 0.0
    %1875 = vmatpush1.xpose.msra.mxu0 0.0
    %1876 = vmatprep.subr.mxu0 0.0
    %1877 = vmatpush1.xpose.msra.mxu0 0.0
    %1878 = vmatprep.subr.mxu0 0.0
    %1879 = vmatpush1.xpose.msra.mxu0 0.0
    %1880 = vmatprep.subr.mxu0 0.0
    %1881 = vmatpush1.xpose.msra.mxu0 0.0
    %1882 = vmatprep.subr.mxu0 0.0
    %1883 = vmatpush1.xpose.msra.mxu0 0.0
    %1884 = vmatprep.subr.mxu0 0.0
    %1885 = vmatpush1.xpose.msra.mxu0 0.0
    %1886 = vmatprep.subr.mxu0 0.0
    %1887 = vmatpush1.xpose.msra.mxu0 0.0
    %1888 = vmatprep.subr.mxu0 0.0
    %1889 = vmatpush1.xpose.msra.mxu0 0.0
    %1890 = vmatprep.subr.mxu0 0.0
    %1891 = vmatpush1.xpose.msra.mxu0 0.0
    %1892 = vmatprep.subr.mxu0 0.0
    %1893 = vmatpush1.xpose.msra.mxu0 0.0
    %1894 = vmatprep.subr.mxu0 0.0
    %1895 = vmatpush1.xpose.msra.mxu0 0.0
    %1896 = vmatprep.subr.mxu0 0.0
    %1897 = vmatpush1.xpose.msra.mxu0 0.0
    %1898 = vmatprep.subr.mxu0 0.0
    %1899 = vmatpush1.xpose.msra.mxu0 0.0
    %1900 = vmatprep.subr.mxu0 0.0
    %1901 = vmatpush1.xpose.msra.mxu0 0.0
    %1902 = vmatprep.subr.mxu0 0.0
    %1903 = vmatpush1.xpose.msra.mxu0 0.0
    %v1904 = vand.u32 %v150, 4294901760
    %1905 = vmatprep.mubr.f32.mxu0 %v1904
    %v1906 = vand.u32 %v149, 4294901760
    %1907 = vmatmul.mubr.f32.gmra.mrb[0].mxu0 %v1906
    %v1908 = vpop.f32.mrb[0].mxu0
    %v1909 = vadd.f32 %v1808, %v1908
    %v1910 = vpop.f32.mrb[0].mxu0
    %v1911 = vand.u32 %v153, 4294901760
    %1912 = vmatprep.mubr.f32.mxu0 %v1911
    %v1913 = vand.u32 %v152, 4294901760
    %1914 = vmatmul.mubr.f32.gmra.mrb[0].mxu0 %v1913
    %v1915 = vpop.f32.mrb[0].mxu0
    %v1916 = vadd.f32 %v1815, %v1915
    %v1917 = vpop.f32.mrb[0].mxu0
    %v1918 = vand.u32 %v156, 4294901760
    %1919 = vmatprep.mubr.f32.mxu0 %v1918
    %v1920 = vand.u32 %v155, 4294901760
    %1921 = vmatmul.mubr.f32.gmra.mrb[0].mxu0 %v1920
    %v1922 = vpop.f32.mrb[0].mxu0
    %v1923 = vadd.f32 %v1822, %v1922
    %v1924 = vpop.f32.mrb[0].mxu0
    %v1925 = vand.u32 %v159, 4294901760
    %1926 = vmatprep.mubr.f32.mxu0 %v1925
    %v1927 = vand.u32 %v158, 4294901760
    %1928 = vmatmul.mubr.f32.gmra.mrb[0].mxu0 %v1927
    %v1929 = vpop.f32.mrb[0].mxu0
    %v1930 = vadd.f32 %v1829, %v1929
    %v1931 = vpop.f32.mrb[0].mxu0
    %1932 = vdwg.mxu0
    %1933 = vmatprep.subr.mxu0 0.0
    %v1934 = vand.u32 %v151, 4294901760
    %1935 = vmatpush1.xpose.msra.mxu0 %v1934
    %1936 = vmatprep.subr.mxu0 0.0
    %v1937 = vand.u32 %v154, 4294901760
    %1938 = vmatpush1.xpose.msra.mxu0 %v1937
    %1939 = vmatprep.subr.mxu0 0.0
    %v1940 = vand.u32 %v157, 4294901760
    %1941 = vmatpush1.xpose.msra.mxu0 %v1940
    %1942 = vmatprep.subr.mxu0 0.0
    %v1943 = vand.u32 %v160, 4294901760
    %1944 = vmatpush1.xpose.msra.mxu0 %v1943
    %1945 = vmatprep.subr.mxu0 0.0
    %1946 = vmatpush1.xpose.msra.mxu0 0.0
    %1947 = vmatprep.subr.mxu0 0.0
    %1948 = vmatpush1.xpose.msra.mxu0 0.0
    %1949 = vmatprep.subr.mxu0 0.0
    %1950 = vmatpush1.xpose.msra.mxu0 0.0
    %1951 = vmatprep.subr.mxu0 0.0
    %1952 = vmatpush1.xpose.msra.mxu0 0.0
    %1953 = vmatprep.subr.mxu0 0.0
    %1954 = vmatpush1.xpose.msra.mxu0 0.0
    %1955 = vmatprep.subr.mxu0 0.0
    %1956 = vmatpush1.xpose.msra.mxu0 0.0
    %1957 = vmatprep.subr.mxu0 0.0
    %1958 = vmatpush1.xpose.msra.mxu0 0.0
    %1959 = vmatprep.subr.mxu0 0.0
    %1960 = vmatpush1.xpose.msra.mxu0 0.0
    %1961 = vmatprep.subr.mxu0 0.0
    %1962 = vmatpush1.xpose.msra.mxu0 0.0
    %1963 = vmatprep.subr.mxu0 0.0
    %1964 = vmatpush1.xpose.msra.mxu0 0.0
    %1965 = vmatprep.subr.mxu0 0.0
    %1966 = vmatpush1.xpose.msra.mxu0 0.0
    %1967 = vmatprep.subr.mxu0 0.0
    %1968 = vmatpush1.xpose.msra.mxu0 0.0
    %1969 = vmatprep.subr.mxu0 0.0
    %1970 = vmatpush1.xpose.msra.mxu0 0.0
    %1971 = vmatprep.subr.mxu0 0.0
    %1972 = vmatpush1.xpose.msra.mxu0 0.0
    %1973 = vmatprep.subr.mxu0 0.0
    %1974 = vmatpush1.xpose.msra.mxu0 0.0
    %1975 = vmatprep.subr.mxu0 0.0
    %1976 = vmatpush1.xpose.msra.mxu0 0.0
    %1977 = vmatprep.subr.mxu0 0.0
    %1978 = vmatpush1.xpose.msra.mxu0 0.0
    %1979 = vmatprep.subr.mxu0 0.0
    %1980 = vmatpush1.xpose.msra.mxu0 0.0
    %1981 = vmatprep.subr.mxu0 0.0
    %1982 = vmatpush1.xpose.msra.mxu0 0.0
    %1983 = vmatprep.subr.mxu0 0.0
    %1984 = vmatpush1.xpose.msra.mxu0 0.0
    %1985 = vmatprep.subr.mxu0 0.0
    %1986 = vmatpush1.xpose.msra.mxu0 0.0
    %1987 = vmatprep.subr.mxu0 0.0
    %1988 = vmatpush1.xpose.msra.mxu0 0.0
    %1989 = vmatprep.subr.mxu0 0.0
    %1990 = vmatpush1.xpose.msra.mxu0 0.0
    %1991 = vmatprep.subr.mxu0 0.0
    %1992 = vmatpush1.xpose.msra.mxu0 0.0
    %1993 = vmatprep.subr.mxu0 0.0
    %1994 = vmatpush1.xpose.msra.mxu0 0.0
    %1995 = vmatprep.subr.mxu0 0.0
    %1996 = vmatpush1.xpose.msra.mxu0 0.0
    %1997 = vmatprep.subr.mxu0 0.0
    %1998 = vmatpush1.xpose.msra.mxu0 0.0
    %1999 = vmatprep.subr.mxu0 0.0
    %2000 = vmatpush1.xpose.msra.mxu0 0.0
    %2001 = vmatprep.mubr.f32.mxu0 0.0
    %v2002 = vand.u32 %v151, 4294901760
    %v2003 = vsub.f32 %v151, %v2002
    %v2004 = vand.u32 %v2003, 4294901760
    %v2005 = vsub.f32 %v2003, %v2004
    %v2006 = vand.u32 %v2005, 4294901760
    %2007 = vmatmul.mubr.f32.gmra.mrb[0].mxu0 %v2006
    %v2008 = vpop.f32.mrb[0].mxu0
    %v2009 = vadd.f32 %v1909, %v2008
    %v2010 = vpop.f32.mrb[0].mxu0
    %2011 = vmatprep.mubr.f32.mxu0 0.0
    %v2012 = vand.u32 %v154, 4294901760
    %v2013 = vsub.f32 %v154, %v2012
    %v2014 = vand.u32 %v2013, 4294901760
    %v2015 = vsub.f32 %v2013, %v2014
    %v2016 = vand.u32 %v2015, 4294901760
    %2017 = vmatmul.mubr.f32.gmra.mrb[0].mxu0 %v2016
    %v2018 = vpop.f32.mrb[0].mxu0
    %v2019 = vadd.f32 %v1916, %v2018
    %v2020 = vpop.f32.mrb[0].mxu0
    %2021 = vmatprep.mubr.f32.mxu0 0.0
    %v2022 = vand.u32 %v157, 4294901760
    %v2023 = vsub.f32 %v157, %v2022
    %v2024 = vand.u32 %v2023, 4294901760
    %v2025 = vsub.f32 %v2023, %v2024
    %v2026 = vand.u32 %v2025, 4294901760
    %2027 = vmatmul.mubr.f32.gmra.mrb[0].mxu0 %v2026
    %v2028 = vpop.f32.mrb[0].mxu0
    %v2029 = vadd.f32 %v1923, %v2028
    %v2030 = vpop.f32.mrb[0].mxu0
    %2031 = vmatprep.mubr.f32.mxu0 0.0
    %v2032 = vand.u32 %v160, 4294901760
    %v2033 = vsub.f32 %v160, %v2032
    %v2034 = vand.u32 %v2033, 4294901760
    %v2035 = vsub.f32 %v2033, %v2034
    %v2036 = vand.u32 %v2035, 4294901760
    %2037 = vmatmul.mubr.f32.gmra.mrb[0].mxu0 %v2036
    %v2038 = vpop.f32.mrb[0].mxu0
    %v2039 = vadd.f32 %v1930, %v2038
    %v2040 = vpop.f32.mrb[0].mxu0
    %2041 = vdwg.mxu0
    %2042 = vmatprep.subr.mxu0 0.0
    %v2043 = vand.u32 %v151, 4294901760
    %v2044 = vsub.f32 %v151, %v2043
    %v2045 = vand.u32 %v2044, 4294901760
    %v2046 = vsub.f32 %v2044, %v2045
    %v2047 = vand.u32 %v2046, 4294901760
    %2048 = vmatpush1.xpose.msra.mxu0 %v2047
    %2049 = vmatprep.subr.mxu0 0.0
    %v2050 = vand.u32 %v154, 4294901760
    %v2051 = vsub.f32 %v154, %v2050
    %v2052 = vand.u32 %v2051, 4294901760
    %v2053 = vsub.f32 %v2051, %v2052
    %v2054 = vand.u32 %v2053, 4294901760
    %2055 = vmatpush1.xpose.msra.mxu0 %v2054
    %2056 = vmatprep.subr.mxu0 0.0
    %v2057 = vand.u32 %v157, 4294901760
    %v2058 = vsub.f32 %v157, %v2057
    %v2059 = vand.u32 %v2058, 4294901760
    %v2060 = vsub.f32 %v2058, %v2059
    %v2061 = vand.u32 %v2060, 4294901760
    %2062 = vmatpush1.xpose.msra.mxu0 %v2061
    %2063 = vmatprep.subr.mxu0 0.0
    %v2064 = vand.u32 %v160, 4294901760
    %v2065 = vsub.f32 %v160, %v2064
    %v2066 = vand.u32 %v2065, 4294901760
    %v2067 = vsub.f32 %v2065, %v2066
    %v2068 = vand.u32 %v2067, 4294901760
    %2069 = vmatpush1.xpose.msra.mxu0 %v2068
    %2070 = vmatprep.subr.mxu0 0.0
    %2071 = vmatpush1.xpose.msra.mxu0 0.0
    %2072 = vmatprep.subr.mxu0 0.0
    %2073 = vmatpush1.xpose.msra.mxu0 0.0
    %2074 = vmatprep.subr.mxu0 0.0
    %2075 = vmatpush1.xpose.msra.mxu0 0.0
    %2076 = vmatprep.subr.mxu0 0.0
    %2077 = vmatpush1.xpose.msra.mxu0 0.0
    %2078 = vmatprep.subr.mxu0 0.0
    %2079 = vmatpush1.xpose.msra.mxu0 0.0
    %2080 = vmatprep.subr.mxu0 0.0
    %2081 = vmatpush1.xpose.msra.mxu0 0.0
    %2082 = vmatprep.subr.mxu0 0.0
    %2083 = vmatpush1.xpose.msra.mxu0 0.0
    %2084 = vmatprep.subr.mxu0 0.0
    %2085 = vmatpush1.xpose.msra.mxu0 0.0
    %2086 = vmatprep.subr.mxu0 0.0
    %2087 = vmatpush1.xpose.msra.mxu0 0.0
    %2088 = vmatprep.subr.mxu0 0.0
    %2089 = vmatpush1.xpose.msra.mxu0 0.0
    %2090 = vmatprep.subr.mxu0 0.0
    %2091 = vmatpush1.xpose.msra.mxu0 0.0
    %2092 = vmatprep.subr.mxu0 0.0
    %2093 = vmatpush1.xpose.msra.mxu0 0.0
    %2094 = vmatprep.subr.mxu0 0.0
    %2095 = vmatpush1.xpose.msra.mxu0 0.0
    %2096 = vmatprep.subr.mxu0 0.0
    %2097 = vmatpush1.xpose.msra.mxu0 0.0
    %2098 = vmatprep.subr.mxu0 0.0
    %2099 = vmatpush1.xpose.msra.mxu0 0.0
    %2100 = vmatprep.subr.mxu0 0.0
    %2101 = vmatpush1.xpose.msra.mxu0 0.0
    %2102 = vmatprep.subr.mxu0 0.0
    %2103 = vmatpush1.xpose.msra.mxu0 0.0
    %2104 = vmatprep.subr.mxu0 0.0
    %2105 = vmatpush1.xpose.msra.mxu0 0.0
    %2106 = vmatprep.subr.mxu0 0.0
    %2107 = vmatpush1.xpose.msra.mxu0 0.0
    %2108 = vmatprep.subr.mxu0 0.0
    %2109 = vmatpush1.xpose.msra.mxu0 0.0
    %2110 = vmatprep.subr.mxu0 0.0
    %2111 = vmatpush1.xpose.msra.mxu0 0.0
    %2112 = vmatprep.subr.mxu0 0.0
    %2113 = vmatpush1.xpose.msra.mxu0 0.0
    %2114 = vmatprep.subr.mxu0 0.0
    %2115 = vmatpush1.xpose.msra.mxu0 0.0
    %2116 = vmatprep.subr.mxu0 0.0
    %2117 = vmatpush1.xpose.msra.mxu0 0.0
    %2118 = vmatprep.subr.mxu0 0.0
    %2119 = vmatpush1.xpose.msra.mxu0 0.0
    %2120 = vmatprep.subr.mxu0 0.0
    %2121 = vmatpush1.xpose.msra.mxu0 0.0
    %2122 = vmatprep.subr.mxu0 0.0
    %2123 = vmatpush1.xpose.msra.mxu0 0.0
    %2124 = vmatprep.subr.mxu0 0.0
    %2125 = vmatpush1.xpose.msra.mxu0 0.0
    %2126 = vmatprep.mubr.f32.mxu0 0.0
    %v2127 = vand.u32 %v151, 4294901760
    %2128 = vmatmul.mubr.f32.gmra.mrb[0].mxu0 %v2127
    %v2129 = vpop.f32.mrb[0].mxu0
    %v2130 = vadd.f32 %v2009, %v2129
    %v2131 = vpop.f32.mrb[0].mxu0
    %2132 = vmatprep.mubr.f32.mxu0 0.0
    %v2133 = vand.u32 %v154, 4294901760
    %2134 = vmatmul.mubr.f32.gmra.mrb[0].mxu0 %v2133
    %v2135 = vpop.f32.mrb[0].mxu0
    %v2136 = vadd.f32 %v2019, %v2135
    %v2137 = vpop.f32.mrb[0].mxu0
    %2138 = vmatprep.mubr.f32.mxu0 0.0
    %v2139 = vand.u32 %v157, 4294901760
    %2140 = vmatmul.mubr.f32.gmra.mrb[0].mxu0 %v2139
    %v2141 = vpop.f32.mrb[0].mxu0
    %v2142 = vadd.f32 %v2029, %v2141
    %v2143 = vpop.f32.mrb[0].mxu0
    %2144 = vmatprep.mubr.f32.mxu0 0.0
    %v2145 = vand.u32 %v160, 4294901760
    %2146 = vmatmul.mubr.f32.gmra.mrb[0].mxu0 %v2145
    %v2147 = vpop.f32.mrb[0].mxu0
    %v2148 = vadd.f32 %v2039, %v2147
    %v2149 = vpop.f32.mrb[0].mxu0
    %2150 = vdwg.mxu0
    %2151 = vmatprep.subr.mxu0 0.0
    %v2152 = vand.u32 %v151, 4294901760
    %v2153 = vsub.f32 %v151, %v2152
    %2154 = vmatpush1.xpose.msra.mxu0 %v2153
    %2155 = vmatprep.subr.mxu0 0.0
    %v2156 = vand.u32 %v154, 4294901760
    %v2157 = vsub.f32 %v154, %v2156
    %2158 = vmatpush1.xpose.msra.mxu0 %v2157
    %2159 = vmatprep.subr.mxu0 0.0
    %v2160 = vand.u32 %v157, 4294901760
    %v2161 = vsub.f32 %v157, %v2160
    %2162 = vmatpush1.xpose.msra.mxu0 %v2161
    %2163 = vmatprep.subr.mxu0 0.0
    %v2164 = vand.u32 %v160, 4294901760
    %v2165 = vsub.f32 %v160, %v2164
    %2166 = vmatpush1.xpose.msra.mxu0 %v2165
    %2167 = vmatprep.subr.mxu0 0.0
    %2168 = vmatpush1.xpose.msra.mxu0 0.0
    %2169 = vmatprep.subr.mxu0 0.0
    %2170 = vmatpush1.xpose.msra.mxu0 0.0
    %2171 = vmatprep.subr.mxu0 0.0
    %2172 = vmatpush1.xpose.msra.mxu0 0.0
    %2173 = vmatprep.subr.mxu0 0.0
    %2174 = vmatpush1.xpose.msra.mxu0 0.0
    %2175 = vmatprep.subr.mxu0 0.0
    %2176 = vmatpush1.xpose.msra.mxu0 0.0
    %2177 = vmatprep.subr.mxu0 0.0
    %2178 = vmatpush1.xpose.msra.mxu0 0.0
    %2179 = vmatprep.subr.mxu0 0.0
    %2180 = vmatpush1.xpose.msra.mxu0 0.0
    %2181 = vmatprep.subr.mxu0 0.0
    %2182 = vmatpush1.xpose.msra.mxu0 0.0
    %2183 = vmatprep.subr.mxu0 0.0
    %2184 = vmatpush1.xpose.msra.mxu0 0.0
    %2185 = vmatprep.subr.mxu0 0.0
    %2186 = vmatpush1.xpose.msra.mxu0 0.0
    %2187 = vmatprep.subr.mxu0 0.0
    %2188 = vmatpush1.xpose.msra.mxu0 0.0
    %2189 = vmatprep.subr.mxu0 0.0
    %2190 = vmatpush1.xpose.msra.mxu0 0.0
    %2191 = vmatprep.subr.mxu0 0.0
    %2192 = vmatpush1.xpose.msra.mxu0 0.0
    %2193 = vmatprep.subr.mxu0 0.0
    %2194 = vmatpush1.xpose.msra.mxu0 0.0
    %2195 = vmatprep.subr.mxu0 0.0
    %2196 = vmatpush1.xpose.msra.mxu0 0.0
    %2197 = vmatprep.subr.mxu0 0.0
    %2198 = vmatpush1.xpose.msra.mxu0 0.0
    %2199 = vmatprep.subr.mxu0 0.0
    %2200 = vmatpush1.xpose.msra.mxu0 0.0
    %2201 = vmatprep.subr.mxu0 0.0
    %2202 = vmatpush1.xpose.msra.mxu0 0.0
    %2203 = vmatprep.subr.mxu0 0.0
    %2204 = vmatpush1.xpose.msra.mxu0 0.0
    %2205 = vmatprep.subr.mxu0 0.0
    %2206 = vmatpush1.xpose.msra.mxu0 0.0
    %2207 = vmatprep.subr.mxu0 0.0
    %2208 = vmatpush1.xpose.msra.mxu0 0.0
    %2209 = vmatprep.subr.mxu0 0.0
    %2210 = vmatpush1.xpose.msra.mxu0 0.0
    %2211 = vmatprep.subr.mxu0 0.0
    %2212 = vmatpush1.xpose.msra.mxu0 0.0
    %2213 = vmatprep.subr.mxu0 0.0
    %2214 = vmatpush1.xpose.msra.mxu0 0.0
    %2215 = vmatprep.subr.mxu0 0.0
    %2216 = vmatpush1.xpose.msra.mxu0 0.0
    %2217 = vmatprep.subr.mxu0 0.0
    %2218 = vmatpush1.xpose.msra.mxu0 0.0
    %2219 = vmatprep.subr.mxu0 0.0
    %2220 = vmatpush1.xpose.msra.mxu0 0.0
    %2221 = vmatprep.subr.mxu0 0.0
    %2222 = vmatpush1.xpose.msra.mxu0 0.0
    %2223 = vmatprep.mubr.f32.mxu0 0.0
    %v2224 = vand.u32 %v151, 4294901760
    %v2225 = vsub.f32 %v151, %v2224
    %2226 = vmatmul.mubr.f32.gmra.mrb[0].mxu0 %v2225
    %v2227 = vpop.f32.mrb[0].mxu0
    %v2228 = vadd.f32 %v2130, %v2227
    %v2229 = vpop.f32.mrb[0].mxu0
    %2230 = vmatprep.mubr.f32.mxu0 0.0
    %v2231 = vand.u32 %v154, 4294901760
    %v2232 = vsub.f32 %v154, %v2231
    %2233 = vmatmul.mubr.f32.gmra.mrb[0].mxu0 %v2232
    %v2234 = vpop.f32.mrb[0].mxu0
    %v2235 = vadd.f32 %v2136, %v2234
    %v2236 = vpop.f32.mrb[0].mxu0
    %2237 = vmatprep.mubr.f32.mxu0 0.0
    %v2238 = vand.u32 %v157, 4294901760
    %v2239 = vsub.f32 %v157, %v2238
    %2240 = vmatmul.mubr.f32.gmra.mrb[0].mxu0 %v2239
    %v2241 = vpop.f32.mrb[0].mxu0
    %v2242 = vadd.f32 %v2142, %v2241
    %v2243 = vpop.f32.mrb[0].mxu0
    %2244 = vmatprep.mubr.f32.mxu0 0.0
    %v2245 = vand.u32 %v160, 4294901760
    %v2246 = vsub.f32 %v160, %v2245
    %2247 = vmatmul.mubr.f32.gmra.mrb[0].mxu0 %v2246
    %v2248 = vpop.f32.mrb[0].mxu0
    %v2249 = vadd.f32 %v2148, %v2248
    %v2250 = vpop.f32.mrb[0].mxu0
    %2251 = vdwg.mxu0
    %2252 = vmatprep.subr.mxu0 0.0
    %v2253 = vand.u32 %v151, 4294901760
    %2254 = vmatpush1.xpose.msra.mxu0 %v2253
    %2255 = vmatprep.subr.mxu0 0.0
    %v2256 = vand.u32 %v154, 4294901760
    %2257 = vmatpush1.xpose.msra.mxu0 %v2256
    %2258 = vmatprep.subr.mxu0 0.0
    %v2259 = vand.u32 %v157, 4294901760
    %2260 = vmatpush1.xpose.msra.mxu0 %v2259
    %2261 = vmatprep.subr.mxu0 0.0
    %v2262 = vand.u32 %v160, 4294901760
    %2263 = vmatpush1.xpose.msra.mxu0 %v2262
    %2264 = vmatprep.subr.mxu0 0.0
    %2265 = vmatpush1.xpose.msra.mxu0 0.0
    %2266 = vmatprep.subr.mxu0 0.0
    %2267 = vmatpush1.xpose.msra.mxu0 0.0
    %2268 = vmatprep.subr.mxu0 0.0
    %2269 = vmatpush1.xpose.msra.mxu0 0.0
    %2270 = vmatprep.subr.mxu0 0.0
    %2271 = vmatpush1.xpose.msra.mxu0 0.0
    %2272 = vmatprep.subr.mxu0 0.0
    %2273 = vmatpush1.xpose.msra.mxu0 0.0
    %2274 = vmatprep.subr.mxu0 0.0
    %2275 = vmatpush1.xpose.msra.mxu0 0.0
    %2276 = vmatprep.subr.mxu0 0.0
    %2277 = vmatpush1.xpose.msra.mxu0 0.0
    %2278 = vmatprep.subr.mxu0 0.0
    %2279 = vmatpush1.xpose.msra.mxu0 0.0
    %2280 = vmatprep.subr.mxu0 0.0
    %2281 = vmatpush1.xpose.msra.mxu0 0.0
    %2282 = vmatprep.subr.mxu0 0.0
    %2283 = vmatpush1.xpose.msra.mxu0 0.0
    %2284 = vmatprep.subr.mxu0 0.0
    %2285 = vmatpush1.xpose.msra.mxu0 0.0
    %2286 = vmatprep.subr.mxu0 0.0
    %2287 = vmatpush1.xpose.msra.mxu0 0.0
    %2288 = vmatprep.subr.mxu0 0.0
    %2289 = vmatpush1.xpose.msra.mxu0 0.0
    %2290 = vmatprep.subr.mxu0 0.0
    %2291 = vmatpush1.xpose.msra.mxu0 0.0
    %2292 = vmatprep.subr.mxu0 0.0
    %2293 = vmatpush1.xpose.msra.mxu0 0.0
    %2294 = vmatprep.subr.mxu0 0.0
    %2295 = vmatpush1.xpose.msra.mxu0 0.0
    %2296 = vmatprep.subr.mxu0 0.0
    %2297 = vmatpush1.xpose.msra.mxu0 0.0
    %2298 = vmatprep.subr.mxu0 0.0
    %2299 = vmatpush1.xpose.msra.mxu0 0.0
    %2300 = vmatprep.subr.mxu0 0.0
    %2301 = vmatpush1.xpose.msra.mxu0 0.0
    %2302 = vmatprep.subr.mxu0 0.0
    %2303 = vmatpush1.xpose.msra.mxu0 0.0
    %2304 = vmatprep.subr.mxu0 0.0
    %2305 = vmatpush1.xpose.msra.mxu0 0.0
    %2306 = vmatprep.subr.mxu0 0.0
    %2307 = vmatpush1.xpose.msra.mxu0 0.0
    %2308 = vmatprep.subr.mxu0 0.0
    %2309 = vmatpush1.xpose.msra.mxu0 0.0
    %2310 = vmatprep.subr.mxu0 0.0
    %2311 = vmatpush1.xpose.msra.mxu0 0.0
    %2312 = vmatprep.subr.mxu0 0.0
    %2313 = vmatpush1.xpose.msra.mxu0 0.0
    %2314 = vmatprep.subr.mxu0 0.0
    %2315 = vmatpush1.xpose.msra.mxu0 0.0
    %2316 = vmatprep.subr.mxu0 0.0
    %2317 = vmatpush1.xpose.msra.mxu0 0.0
    %2318 = vmatprep.subr.mxu0 0.0
    %2319 = vmatpush1.xpose.msra.mxu0 0.0
    %2320 = vmatprep.mubr.f32.mxu0 0.0
    %v2321 = vand.u32 %v151, 4294901760
    %v2322 = vsub.f32 %v151, %v2321
    %v2323 = vand.u32 %v2322, 4294901760
    %2324 = vmatmul.mubr.f32.gmra.mrb[0].mxu0 %v2323
    %v2325 = vpop.f32.mrb[0].mxu0
    %v2326 = vadd.f32 %v2228, %v2325
    %v2327 = vpop.f32.mrb[0].mxu0
    %2328 = vmatprep.mubr.f32.mxu0 0.0
    %v2329 = vand.u32 %v154, 4294901760
    %v2330 = vsub.f32 %v154, %v2329
    %v2331 = vand.u32 %v2330, 4294901760
    %2332 = vmatmul.mubr.f32.gmra.mrb[0].mxu0 %v2331
    %v2333 = vpop.f32.mrb[0].mxu0
    %v2334 = vadd.f32 %v2235, %v2333
    %v2335 = vpop.f32.mrb[0].mxu0
    %2336 = vmatprep.mubr.f32.mxu0 0.0
    %v2337 = vand.u32 %v157, 4294901760
    %v2338 = vsub.f32 %v157, %v2337
    %v2339 = vand.u32 %v2338, 4294901760
    %2340 = vmatmul.mubr.f32.gmra.mrb[0].mxu0 %v2339
    %v2341 = vpop.f32.mrb[0].mxu0
    %v2342 = vadd.f32 %v2242, %v2341
    %v2343 = vpop.f32.mrb[0].mxu0
    %2344 = vmatprep.mubr.f32.mxu0 0.0
    %v2345 = vand.u32 %v160, 4294901760
    %v2346 = vsub.f32 %v160, %v2345
    %v2347 = vand.u32 %v2346, 4294901760
    %2348 = vmatmul.mubr.f32.gmra.mrb[0].mxu0 %v2347
    %v2349 = vpop.f32.mrb[0].mxu0
    %v2350 = vadd.f32 %v2249, %v2349
    %v2351 = vpop.f32.mrb[0].mxu0
    %2352 = vdwg.mxu0
    %2353 = vmatprep.subr.mxu0 0.0
    %v2354 = vand.u32 %v151, 4294901760
    %v2355 = vsub.f32 %v151, %v2354
    %v2356 = vand.u32 %v2355, 4294901760
    %2357 = vmatpush1.xpose.msra.mxu0 %v2356
    %2358 = vmatprep.subr.mxu0 0.0
    %v2359 = vand.u32 %v154, 4294901760
    %v2360 = vsub.f32 %v154, %v2359
    %v2361 = vand.u32 %v2360, 4294901760
    %2362 = vmatpush1.xpose.msra.mxu0 %v2361
    %2363 = vmatprep.subr.mxu0 0.0
    %v2364 = vand.u32 %v157, 4294901760
    %v2365 = vsub.f32 %v157, %v2364
    %v2366 = vand.u32 %v2365, 4294901760
    %2367 = vmatpush1.xpose.msra.mxu0 %v2366
    %2368 = vmatprep.subr.mxu0 0.0
    %v2369 = vand.u32 %v160, 4294901760
    %v2370 = vsub.f32 %v160, %v2369
    %v2371 = vand.u32 %v2370, 4294901760
    %2372 = vmatpush1.xpose.msra.mxu0 %v2371
    %2373 = vmatprep.subr.mxu0 0.0
    %2374 = vmatpush1.xpose.msra.mxu0 0.0
    %2375 = vmatprep.subr.mxu0 0.0
    %2376 = vmatpush1.xpose.msra.mxu0 0.0
    %2377 = vmatprep.subr.mxu0 0.0
    %2378 = vmatpush1.xpose.msra.mxu0 0.0
    %2379 = vmatprep.subr.mxu0 0.0
    %2380 = vmatpush1.xpose.msra.mxu0 0.0
    %2381 = vmatprep.subr.mxu0 0.0
    %2382 = vmatpush1.xpose.msra.mxu0 0.0
    %2383 = vmatprep.subr.mxu0 0.0
    %2384 = vmatpush1.xpose.msra.mxu0 0.0
    %2385 = vmatprep.subr.mxu0 0.0
    %2386 = vmatpush1.xpose.msra.mxu0 0.0
    %2387 = vmatprep.subr.mxu0 0.0
    %2388 = vmatpush1.xpose.msra.mxu0 0.0
    %2389 = vmatprep.subr.mxu0 0.0
    %2390 = vmatpush1.xpose.msra.mxu0 0.0
    %2391 = vmatprep.subr.mxu0 0.0
    %2392 = vmatpush1.xpose.msra.mxu0 0.0
    %2393 = vmatprep.subr.mxu0 0.0
    %2394 = vmatpush1.xpose.msra.mxu0 0.0
    %2395 = vmatprep.subr.mxu0 0.0
    %2396 = vmatpush1.xpose.msra.mxu0 0.0
    %2397 = vmatprep.subr.mxu0 0.0
    %2398 = vmatpush1.xpose.msra.mxu0 0.0
    %2399 = vmatprep.subr.mxu0 0.0
    %2400 = vmatpush1.xpose.msra.mxu0 0.0
    %2401 = vmatprep.subr.mxu0 0.0
    %2402 = vmatpush1.xpose.msra.mxu0 0.0
    %2403 = vmatprep.subr.mxu0 0.0
    %2404 = vmatpush1.xpose.msra.mxu0 0.0
    %2405 = vmatprep.subr.mxu0 0.0
    %2406 = vmatpush1.xpose.msra.mxu0 0.0
    %2407 = vmatprep.subr.mxu0 0.0
    %2408 = vmatpush1.xpose.msra.mxu0 0.0
    %2409 = vmatprep.subr.mxu0 0.0
    %2410 = vmatpush1.xpose.msra.mxu0 0.0
    %2411 = vmatprep.subr.mxu0 0.0
    %2412 = vmatpush1.xpose.msra.mxu0 0.0
    %2413 = vmatprep.subr.mxu0 0.0
    %2414 = vmatpush1.xpose.msra.mxu0 0.0
    %2415 = vmatprep.subr.mxu0 0.0
    %2416 = vmatpush1.xpose.msra.mxu0 0.0
    %2417 = vmatprep.subr.mxu0 0.0
    %2418 = vmatpush1.xpose.msra.mxu0 0.0
    %2419 = vmatprep.subr.mxu0 0.0
    %2420 = vmatpush1.xpose.msra.mxu0 0.0
    %2421 = vmatprep.subr.mxu0 0.0
    %2422 = vmatpush1.xpose.msra.mxu0 0.0
    %2423 = vmatprep.subr.mxu0 0.0
    %2424 = vmatpush1.xpose.msra.mxu0 0.0
    %2425 = vmatprep.subr.mxu0 0.0
    %2426 = vmatpush1.xpose.msra.mxu0 0.0
    %2427 = vmatprep.subr.mxu0 0.0
    %2428 = vmatpush1.xpose.msra.mxu0 0.0
    %2429 = vmatprep.mubr.f32.mxu0 0.0
    %v2430 = vand.u32 %v151, 4294901760
    %2431 = vmatmul.mubr.f32.gmra.mrb[0].mxu0 %v2430
    %v2432 = vpop.f32.mrb[0].mxu0
    %v2433 = vadd.f32 %v2326, %v2432
    %v2434 = vpop.f32.mrb[0].mxu0
    %2435 = vmatprep.mubr.f32.mxu0 0.0
    %v2436 = vand.u32 %v154, 4294901760
    %2437 = vmatmul.mubr.f32.gmra.mrb[0].mxu0 %v2436
    %v2438 = vpop.f32.mrb[0].mxu0
    %v2439 = vadd.f32 %v2334, %v2438
    %v2440 = vpop.f32.mrb[0].mxu0
    %2441 = vmatprep.mubr.f32.mxu0 0.0
    %v2442 = vand.u32 %v157, 4294901760
    %2443 = vmatmul.mubr.f32.gmra.mrb[0].mxu0 %v2442
    %v2444 = vpop.f32.mrb[0].mxu0
    %v2445 = vadd.f32 %v2342, %v2444
    %v2446 = vpop.f32.mrb[0].mxu0
    %2447 = vmatprep.mubr.f32.mxu0 0.0
    %v2448 = vand.u32 %v160, 4294901760
    %2449 = vmatmul.mubr.f32.gmra.mrb[0].mxu0 %v2448
    %v2450 = vpop.f32.mrb[0].mxu0
    %v2451 = vadd.f32 %v2350, %v2450
    %v2452 = vpop.f32.mrb[0].mxu0
    %2453 = vdwg.mxu0
    %2454 = vmatprep.subr.mxu0 0.0
    %v2455 = vand.u32 %v151, 4294901760
    %2456 = vmatpush1.xpose.msra.mxu0 %v2455
    %2457 = vmatprep.subr.mxu0 0.0
    %v2458 = vand.u32 %v154, 4294901760
    %2459 = vmatpush1.xpose.msra.mxu0 %v2458
    %2460 = vmatprep.subr.mxu0 0.0
    %v2461 = vand.u32 %v157, 4294901760
    %2462 = vmatpush1.xpose.msra.mxu0 %v2461
    %2463 = vmatprep.subr.mxu0 0.0
    %v2464 = vand.u32 %v160, 4294901760
    %2465 = vmatpush1.xpose.msra.mxu0 %v2464
    %2466 = vmatprep.subr.mxu0 0.0
    %2467 = vmatpush1.xpose.msra.mxu0 0.0
    %2468 = vmatprep.subr.mxu0 0.0
    %2469 = vmatpush1.xpose.msra.mxu0 0.0
    %2470 = vmatprep.subr.mxu0 0.0
    %2471 = vmatpush1.xpose.msra.mxu0 0.0
    %2472 = vmatprep.subr.mxu0 0.0
    %2473 = vmatpush1.xpose.msra.mxu0 0.0
    %2474 = vmatprep.subr.mxu0 0.0
    %2475 = vmatpush1.xpose.msra.mxu0 0.0
    %2476 = vmatprep.subr.mxu0 0.0
    %2477 = vmatpush1.xpose.msra.mxu0 0.0
    %2478 = vmatprep.subr.mxu0 0.0
    %2479 = vmatpush1.xpose.msra.mxu0 0.0
    %2480 = vmatprep.subr.mxu0 0.0
    %2481 = vmatpush1.xpose.msra.mxu0 0.0
    %2482 = vmatprep.subr.mxu0 0.0
    %2483 = vmatpush1.xpose.msra.mxu0 0.0
    %2484 = vmatprep.subr.mxu0 0.0
    %2485 = vmatpush1.xpose.msra.mxu0 0.0
    %2486 = vmatprep.subr.mxu0 0.0
    %2487 = vmatpush1.xpose.msra.mxu0 0.0
    %2488 = vmatprep.subr.mxu0 0.0
    %2489 = vmatpush1.xpose.msra.mxu0 0.0
    %2490 = vmatprep.subr.mxu0 0.0
    %2491 = vmatpush1.xpose.msra.mxu0 0.0
    %2492 = vmatprep.subr.mxu0 0.0
    %2493 = vmatpush1.xpose.msra.mxu0 0.0
    %2494 = vmatprep.subr.mxu0 0.0
    %2495 = vmatpush1.xpose.msra.mxu0 0.0
    %2496 = vmatprep.subr.mxu0 0.0
    %2497 = vmatpush1.xpose.msra.mxu0 0.0
    %2498 = vmatprep.subr.mxu0 0.0
    %2499 = vmatpush1.xpose.msra.mxu0 0.0
    %2500 = vmatprep.subr.mxu0 0.0
    %2501 = vmatpush1.xpose.msra.mxu0 0.0
    %2502 = vmatprep.subr.mxu0 0.0
    %2503 = vmatpush1.xpose.msra.mxu0 0.0
    %2504 = vmatprep.subr.mxu0 0.0
    %2505 = vmatpush1.xpose.msra.mxu0 0.0
    %2506 = vmatprep.subr.mxu0 0.0
    %2507 = vmatpush1.xpose.msra.mxu0 0.0
    %2508 = vmatprep.subr.mxu0 0.0
    %2509 = vmatpush1.xpose.msra.mxu0 0.0
    %2510 = vmatprep.subr.mxu0 0.0
    %2511 = vmatpush1.xpose.msra.mxu0 0.0
    %2512 = vmatprep.subr.mxu0 0.0
    %2513 = vmatpush1.xpose.msra.mxu0 0.0
    %2514 = vmatprep.subr.mxu0 0.0
    %2515 = vmatpush1.xpose.msra.mxu0 0.0
    %2516 = vmatprep.subr.mxu0 0.0
    %2517 = vmatpush1.xpose.msra.mxu0 0.0
    %2518 = vmatprep.subr.mxu0 0.0
    %2519 = vmatpush1.xpose.msra.mxu0 0.0
    %2520 = vmatprep.subr.mxu0 0.0
    %2521 = vmatpush1.xpose.msra.mxu0 0.0
    %2522 = vmatprep.mubr.f32.mxu0 0.0
    %v2523 = vand.u32 %v151, 4294901760
    %2524 = vmatmul.mubr.f32.gmra.mrb[0].mxu0 %v2523
    %v2525 = vpop.f32.mrb[0].mxu0
    %v2526 = vadd.f32 %v2433, %v2525
    %v2527 = vpop.f32.mrb[0].mxu0
    %2528 = vmatprep.mubr.f32.mxu0 0.0
    %v2529 = vand.u32 %v154, 4294901760
    %2530 = vmatmul.mubr.f32.gmra.mrb[0].mxu0 %v2529
    %v2531 = vpop.f32.mrb[0].mxu0
    %v2532 = vadd.f32 %v2439, %v2531
    %v2533 = vpop.f32.mrb[0].mxu0
    %2534 = vmatprep.mubr.f32.mxu0 0.0
    %v2535 = vand.u32 %v157, 4294901760
    %2536 = vmatmul.mubr.f32.gmra.mrb[0].mxu0 %v2535
    %v2537 = vpop.f32.mrb[0].mxu0
    %v2538 = vadd.f32 %v2445, %v2537
    %v2539 = vpop.f32.mrb[0].mxu0
    %2540 = vmatprep.mubr.f32.mxu0 0.0
    %v2541 = vand.u32 %v160, 4294901760
    %2542 = vmatmul.mubr.f32.gmra.mrb[0].mxu0 %v2541
    %v2543 = vpop.f32.mrb[0].mxu0
    %v2544 = vadd.f32 %v2451, %v2543
    %v2545 = vpop.f32.mrb[0].mxu0
    %2546 = vdwg.mxu0
    %v2547 = vadd.f32 %v1211, %v2526
    %v2548 = vadd.f32 %v1212, %v2532
    %v2549 = vadd.f32 %v1213, %v2538
    %v2550 = vadd.f32 %v1214, %v2544
    %2551 = vst.msk [vmem:[#allocation12] sm:$0xff] %vm168, %v2547
    %2552 = vst.msk [vmem:[#allocation12 + $0x8] sm:$0xff] %vm168, %v2548
    %2553 = vst.msk [vmem:[#allocation12 + $0x10] sm:$0xff] %vm168, %v2549
    %2554 = vst.msk [vmem:[#allocation12 + $0x18] sm:$0xff] %vm168, %v2550
    // Predicated region
    $region47: #{tpu_custom_call.1} parent=1 // pred_check
      _
    $region48: #{tpu_custom_call.1} parent=1 // pred_check_branch
      %2556 = sbr.rel (0) target = $region50
    $region49: #{tpu_custom_call.1} parent=1 // pred_region
      %s2558 = ssub.s32 128, 128
      %2559 = vsyncadd [#allocation8], %s2558
      %s2561 = sshll.u32 [#allocation11], 4
      %s2562 = int_to_ptr.vmem [resolvable:$true] %s2561
      %2564 = dma.vmem_to_hbm [thread:$0]  %s2562, 128, %s4, [#allocation8]
    $region50: #{tpu_custom_call.1} parent=1 // pred_fallthru
      _
    // Predicated region
    $region51: #{tpu_custom_call.1} parent=1 // pred_check
      _
    $region52: #{tpu_custom_call.1} parent=1 // pred_check_branch
      %2566 = sbr.rel (0) target = $region54
    $region53: #{tpu_custom_call.1} parent=1 // pred_region
      %s2568 = ssub.s32 512, 512
      %2569 = vsyncadd [#allocation13], %s2568
      %s2570 = sshll.u32 [#allocation12], 4
      %s2571 = int_to_ptr.vmem [resolvable:$true] %s2570
      %2576 = dma.vmem_to_hbm [thread:$0]  %s2571, 512, %s5, [#allocation13], 128, 128, 8
    $region54: #{tpu_custom_call.1} parent=1 // pred_fallthru
      _
    // Predicated region
    $region55: #{tpu_custom_call.1} parent=1 // pred_check
      _
    $region56: #{tpu_custom_call.1} parent=1 // pred_check_branch
      %2578 = sbr.rel (0) target = $region58
    $region57: #{tpu_custom_call.1} parent=1 // pred_region
      %2579 = dma.done [#allocation8], 128
    $region58: #{tpu_custom_call.1} parent=1 // pred_fallthru
      _
    // Predicated region
    $region59: #{tpu_custom_call.1} parent=1 // pred_check
      _
    $region60: #{tpu_custom_call.1} parent=1 // pred_check_branch
      %2581 = sbr.rel (0) target = $region62
    $region61: #{tpu_custom_call.1} parent=1 // pred_region
      %2582 = dma.done [#allocation13], 512
    $region62: #{tpu_custom_call.1} parent=1 // pred_fallthru
      _
    %2583 = vsyncpa [#allocation7], 1
    %2584 = vsyncpa [#allocation10], 1
    %2585 = vsyncpa [#allocation8], 1
    %2586 = vsyncpa [#allocation13], 1
  %2587 = vsyncmov [#allocation3]
  %s2588 = vpop.sfrf %2587
  %p2589 = scmp.eq.s32.totalorder %s2588, 0
  %p2590 = pneg %p2589
  %2592 = shalt.err (%p2590)
  %s2593 = scalar_lea.sflag [#allocation3], 1
  %2594 = vsyncmov %s2593
  %s2595 = vpop.sfrf %2594
  %p2596 = scmp.eq.s32.totalorder %s2595, 0
  %p2597 = pneg %p2596
  %2599 = shalt.err (%p2597)

</llo_original>
